<compile_context>
chip_gen: v5e
topology: v5e:2x2
jax: 0.10.0
libtpu: 0.0.40
codegen_flags: <defaults>
</compile_context>

<pallas_src>
import jax
import jax.numpy as jnp
from jax.experimental import pallas as pl
from jax.experimental.pallas import tpu as pltpu


# ---------------------------------------------------------------------------
# Pallas kernel factories (channels-first: w(Cout,Cin) @ x(Cin,tm) -> (Cout,tm))
# Bb batch images are processed per grid step with a small unrolled loop.
# ---------------------------------------------------------------------------
def _make_conv_bn_relu_kernel(bb):
    def kernel(x_ref, w_ref, b_ref, o_ref):
        w = w_ref[...]
        b = b_ref[...]
        for bi in range(bb):  # static unroll over the batch sub-block
            y = jnp.dot(w, x_ref[bi], preferred_element_type=jnp.float32)
            o_ref[bi] = jnp.maximum(y + b, 0.0)
    return kernel


def _make_freq_conv_bn_relu_kernel(bb, f):
    # Fused equivalent of: conv(concat([re, im], ch)) then split the output
    # into real/imag halves -- no concat, no slices materialized in HBM.
    # Weights are pre-stacked: W_re = W2[:, :f], W_im = W2[:, f:] (each (2f,f)),
    # so only two matmul streams feed a single (2f, tm) accumulator.
    def kernel(re_ref, im_ref, wre_ref, wim_ref, b_ref, ore_ref, oim_ref):
        wre = wre_ref[...]
        wim = wim_ref[...]
        b = b_ref[...]
        for bi in range(bb):
            y = (jnp.dot(wre, re_ref[bi], preferred_element_type=jnp.float32)
                 + jnp.dot(wim, im_ref[bi], preferred_element_type=jnp.float32))
            y = jnp.maximum(y + b, 0.0)
            ore_ref[bi] = y[:f]      # sublane-aligned split when f % 8 == 0
            oim_ref[bi] = y[f:]
    return kernel


def _make_mag_conv_bn_relu_kernel(bb):
    # relu(w @ |re + i*im| + b) -- fuses abs(ifft2) magnitude with out_conv.
    def kernel(re_ref, im_ref, w_ref, b_ref, o_ref):
        w = w_ref[...]
        b = b_ref[...]
        for bi in range(bb):
            re = re_ref[bi]
            im = im_ref[bi]
            mag = jnp.sqrt(re * re + im * im)
            y = jnp.dot(w, mag, preferred_element_type=jnp.float32)
            o_ref[bi] = jnp.maximum(y + b, 0.0)
    return kernel


# ---------------------------------------------------------------------------
# Tiling / call helpers
# ---------------------------------------------------------------------------
_TARGET_PIXELS = 32768   # Bb * tm per grid step; >= 1-4 MiB per buffer here
_LANE = 128


def _round_up(x, m):
    return (x + m - 1) // m * m


def _pick_tiling(N, M):
    """Pick (Bb, tm): batch images per block and pixels per block."""
    if M <= _TARGET_PIXELS:
        tm = M                                   # full-dim pixel block
        budget_b = max(1, _TARGET_PIXELS // max(M, 1))
        Bb = 1
        for d in range(min(N, budget_b), 0, -1):  # largest divisor of N
            if N % d == 0:
                Bb = d
                break
        # keep >= 2 grid steps so both v7x TensorCores get work
        if N // Bb < 2 and N >= 2:
            for d in range(N // 2, 0, -1):
                if N % d == 0:
                    Bb = d
                    break
    else:
        Bb = 1
        tm = 0
        t = (_TARGET_PIXELS // _LANE) * _LANE
        while t >= _LANE:                        # lane-multiple tile dividing M
            if M % t == 0:
                tm = t
                break
            t -= _LANE
        if tm == 0:                              # ragged tail: cdiv grid + masking
            tm = (_TARGET_PIXELS // _LANE) * _LANE
    # single-step grid (N==1, small M): split the pixel axis for 2 TCs
    if pl.cdiv(N, Bb) * pl.cdiv(M, tm) < 2 and M > _LANE:
        Bb = 1
        tm = _round_up(pl.cdiv(M, 2), _LANE)
    return Bb, tm


def _compiler_params(allow_input_fusion=None):
    return pltpu.CompilerParams(
        dimension_semantics=("parallel", "parallel"),
        vmem_limit_bytes=48 * 1024 * 1024,   # v7x-safe (64 MiB physical VMEM)
        allow_input_fusion=allow_input_fusion,
    )


def conv_bn_relu(x_ncm, w, b):
    """x: (N, Cin, M) f32, w: (Cout, Cin), b: (Cout, 1) -> (N, Cout, M)."""
    N, Cin, M = x_ncm.shape
    Cout = w.shape[0]
    Bb, tm = _pick_tiling(N, M)
    grid = (pl.cdiv(N, Bb), pl.cdiv(M, tm))
    cost = pl.CostEstimate(
        flops=2 * N * M * Cin * Cout,
        transcendentals=0,
        bytes_accessed=4 * (N * M * Cin + N * M * Cout + Cin * Cout + Cout),
    )
    return pl.pallas_call(
        _make_conv_bn_relu_kernel(Bb),
        out_shape=jax.ShapeDtypeStruct((N, Cout, M), jnp.float32),
        grid_spec=pltpu.PrefetchScalarGridSpec(
            num_scalar_prefetch=0,
            grid=grid,
            in_specs=[
                pl.BlockSpec((Bb, Cin, tm), lambda n, i: (n, 0, i)),
                pl.BlockSpec((Cout, Cin), lambda n, i: (0, 0)),
                pl.BlockSpec((Cout, 1), lambda n, i: (0, 0)),
            ],
            out_specs=pl.BlockSpec((Bb, Cout, tm), lambda n, i: (n, 0, i)),
        ),
        compiler_params=_compiler_params(allow_input_fusion=[True, False, False]),
        cost_estimate=cost,
    )(x_ncm, w, b)


def freq_conv_bn_relu(re, im, w_re, w_im, b2):
    """re, im: (N, f, M) f32; w_re/w_im: (2f, f); b2: (2f, 1).

    Returns (out_re, out_im), each (N, f, M), equal to the real/imag halves of
    relu(W2 @ concat([re, im], ch) + b2).
    """
    N, f, M = re.shape
    Bb, tm = _pick_tiling(N, M)
    grid = (pl.cdiv(N, Bb), pl.cdiv(M, tm))
    data_spec = pl.BlockSpec((Bb, f, tm), lambda n, i: (n, 0, i))
    w_spec = pl.BlockSpec((2 * f, f), lambda n, i: (0, 0))
    b_spec = pl.BlockSpec((2 * f, 1), lambda n, i: (0, 0))
    out_spec = pl.BlockSpec((Bb, f, tm), lambda n, i: (n, 0, i))
    cost = pl.CostEstimate(
        flops=8 * N * M * f * f,
        transcendentals=0,
        bytes_accessed=4 * (4 * N * M * f + 4 * f * f + 2 * f),
    )
    return pl.pallas_call(
        _make_freq_conv_bn_relu_kernel(Bb, f),
        out_shape=(jax.ShapeDtypeStruct((N, f, M), jnp.float32),
                   jax.ShapeDtypeStruct((N, f, M), jnp.float32)),
        grid_spec=pltpu.PrefetchScalarGridSpec(
            num_scalar_prefetch=0,
            grid=grid,
            in_specs=[data_spec, data_spec, w_spec, w_spec, b_spec],
            out_specs=[out_spec, out_spec],
        ),
        compiler_params=_compiler_params(
            allow_input_fusion=[True, True, False, False, False]),
        cost_estimate=cost,
    )(re, im, w_re, w_im, b2)


def mag_conv_bn_relu(re, im, w, b):
    """re, im: (N, Cin, M) f32 -> relu(w @ sqrt(re^2+im^2) + b): (N, Cout, M)."""
    N, Cin, M = re.shape
    Cout = w.shape[0]
    Bb, tm = _pick_tiling(N, M)
    grid = (pl.cdiv(N, Bb), pl.cdiv(M, tm))
    cost = pl.CostEstimate(
        flops=2 * N * M * Cin * Cout + 3 * N * M * Cin,
        transcendentals=N * M * Cin,
        bytes_accessed=4 * (2 * N * M * Cin + N * M * Cout + Cin * Cout + Cout),
    )
    return pl.pallas_call(
        _make_mag_conv_bn_relu_kernel(Bb),
        out_shape=jax.ShapeDtypeStruct((N, Cout, M), jnp.float32),
        grid_spec=pltpu.PrefetchScalarGridSpec(
            num_scalar_prefetch=0,
            grid=grid,
            in_specs=[
                pl.BlockSpec((Bb, Cin, tm), lambda n, i: (n, 0, i)),
                pl.BlockSpec((Bb, Cin, tm), lambda n, i: (n, 0, i)),
                pl.BlockSpec((Cout, Cin), lambda n, i: (0, 0)),
                pl.BlockSpec((Cout, 1), lambda n, i: (0, 0)),
            ],
            out_specs=pl.BlockSpec((Bb, Cout, tm), lambda n, i: (n, 0, i)),
        ),
        compiler_params=_compiler_params(
            allow_input_fusion=[True, True, False, False]),
        cost_estimate=cost,
    )(re, im, w, b)


# ---------------------------------------------------------------------------
# Parameter construction (deterministic, BN folded, eval-mode semantics)
# ---------------------------------------------------------------------------
def _make_conv_bn(key, cin, cout, eps=1e-5):
    kw, kg, kb, km, kv = jax.random.split(key, 5)
    W = jax.random.normal(kw, (cout, cin), jnp.float32) * (float(cin) ** -0.5)
    gamma = jax.random.uniform(kg, (cout,), jnp.float32, 0.5, 1.5)
    beta = jax.random.normal(kb, (cout,), jnp.float32) * 0.1
    mean = jax.random.normal(km, (cout,), jnp.float32) * 0.1
    var = jax.random.uniform(kv, (cout,), jnp.float32, 0.5, 1.5)
    scale = gamma / jnp.sqrt(var + eps)
    w_folded = W * scale[:, None]                      # (cout, cin)
    b_folded = (beta - mean * scale).reshape(cout, 1)  # (cout, 1)
    return w_folded, b_folded


def init_params(key, out_planes):
    f = out_planes // 4
    k1, k2, k3 = jax.random.split(key, 3)
    w1, b1 = _make_conv_bn(k1, 3, f)                   # in_conv
    w2, b2 = _make_conv_bn(k2, 2 * f, 2 * f)           # conv (frequency domain)
    w3, b3 = _make_conv_bn(k3, f, out_planes)          # out_conv
    return dict(
        w1=w1, b1=b1,
        # pre-stacked frequency-conv weights: y = W_re @ re + W_im @ im + b2
        w2_re=w2[:, :f], w2_im=w2[:, f:], b2=b2,
        w2=w2,                                         # full copy for the reference
        w3=w3, b3=b3,
    )


# ---------------------------------------------------------------------------
# Forward pass (FFT glue in plain JAX, hot paths in Pallas; NCHW throughout)
# ---------------------------------------------------------------------------
def fft_features_forward(img_nchw, params, out_planes):
    N, C, H, W = img_nchw.shape
    f = out_planes // 4
    M = H * W

    x = img_nchw.reshape(N, C, M).astype(jnp.float32)

    # in_conv: 1x1 conv + BN + ReLU  (Pallas)
    x = conv_bn_relu(x, params["w1"], params["b1"])                 # (N, f, M)

    # fft2 over spatial dims (plain JAX; no Pallas FFT primitive)
    x_fft = jnp.fft.fft2(x.reshape(N, f, H, W), axes=(2, 3))
    re = jnp.real(x_fft).reshape(N, f, M)
    im = jnp.imag(x_fft).reshape(N, f, M)

    # frequency conv: fused, no concat in, no slices out  (Pallas)
    o_re, o_im = freq_conv_bn_relu(
        re, im, params["w2_re"], params["w2_im"], params["b2"])     # (N, f, M) x2

    # ifft2, then |.| fused into out_conv
    out_c = jax.lax.complex(o_re.reshape(N, f, H, W), o_im.reshape(N, f, H, W))
    out_ifft = jnp.fft.ifft2(out_c, axes=(2, 3))
    ire = jnp.real(out_ifft).reshape(N, f, M).astype(jnp.float32)
    iim = jnp.imag(out_ifft).reshape(N, f, M).astype(jnp.float32)

    out = mag_conv_bn_relu(ire, iim, params["w3"], params["b3"])    # (N, out_planes, M)
    return out.reshape(N, out_planes, H, W)


# Pure-JAX reference (no Pallas, concat/slice path exactly like PyTorch).
def _reference_forward(img_nchw, params, out_planes):
    N, C, H, W = img_nchw.shape
    f = out_planes // 4
    M = H * W

    def cbr(x_ncm, w, b):  # channels-first 1x1 conv + folded BN + ReLU
        return jnp.maximum(jnp.einsum("oc,ncm->nom", w, x_ncm) + b[None], 0.0)

    x = img_nchw.reshape(N, C, M).astype(jnp.float32)
    x = cbr(x, params["w1"], params["b1"])
    x_fft = jnp.fft.fft2(x.reshape(N, f, H, W), axes=(2, 3))
    x_freq = jnp.concatenate([jnp.real(x_fft), jnp.imag(x_fft)], axis=1)
    out_freq = cbr(x_freq.reshape(N, 2 * f, M), params["w2"], params["b2"])
    out_freq = out_freq.reshape(N, 2 * f, H, W)
    out_c = out_freq[:, :f] + 1j * out_freq[:, f:]
    mag = jnp.abs(jnp.fft.ifft2(out_c, axes=(2, 3))).reshape(N, f, M)
    out = cbr(mag.astype(jnp.float32), params["w3"], params["b3"])
    return out.reshape(N, out_planes, H, W)


if __name__ == "__main__":
    out_planes = 32                        # -> f_data = 8, freq channels = 16
    key = jax.random.PRNGKey(0)
    k_img, k_par = jax.random.split(key)

    img = jax.random.normal(k_img, (2, 3, 16, 16), jnp.float32)   # NCHW like PyTorch
    params = init_params(k_par, out_planes)

    fwd = jax.jit(fft_features_forward, static_argnums=2)
    out = jax.block_until_ready(fwd(img, params, out_planes))

    ref = _reference_forward(img, params, out_planes)
    assert out.shape == (2, out_planes, 16, 16)
    assert jnp.allclose(out, ref, atol=1e-3, rtol=1e-3), float(
        jnp.max(jnp.abs(out - ref)))

    print("KERNEL_OK")
</pallas_src>

<mosaic_0001>
module attributes {stable_mosaic.version = 11 : i64} {
  func.func @kernel(%arg0: i32, %arg1: i32, %arg2: memref<1x3x256xf32, #tpu.memory_space<vmem>>, %arg3: memref<8x3xf32, #tpu.memory_space<vmem>>, %arg4: memref<8x1xf32, #tpu.memory_space<vmem>>, %arg5: memref<1x8x256xf32, #tpu.memory_space<vmem>>) attributes {dimension_semantics = [#tpu.dimension_semantics<parallel>, #tpu.dimension_semantics<parallel>], iteration_bounds = array<i64: 2, 1>, scalar_prefetch = 0 : i64, scratch_operands = 0 : i64, tpu.core_type = #tpu.core_type<tc>, window_params = [{transform_indices = @transform_0, window_bounds = array<i64: 1, 3, 256>}, {pipeline_mode = #tpu.pipeline_mode<synchronous>, transform_indices = @transform_1, window_bounds = array<i64: 8, 3>}, {pipeline_mode = #tpu.pipeline_mode<synchronous>, transform_indices = @transform_2, window_bounds = array<i64: 8, 1>}, {transform_indices = @transform_3, window_bounds = array<i64: 1, 8, 256>}]} {
    %c0 = arith.constant 0 : index
    %c0_0 = arith.constant 0 : index
    %0 = vector.load %arg3[%c0, %c0_0] : memref<8x3xf32, #tpu.memory_space<vmem>>, vector<8x3xf32>
    %c0_1 = arith.constant 0 : index
    %c0_2 = arith.constant 0 : index
    %1 = vector.load %arg4[%c0_1, %c0_2] : memref<8x1xf32, #tpu.memory_space<vmem>>, vector<8x1xf32>
    %c0_3 = arith.constant 0 : index
    %c0_4 = arith.constant 0 : index
    %c0_5 = arith.constant 0 : index
    %2 = vector.load %arg2[%c0_3, %c0_4, %c0_5] : memref<1x3x256xf32, #tpu.memory_space<vmem>>, vector<1x3x256xf32>
    %3 = vector.shape_cast %2 : vector<1x3x256xf32> to vector<3x256xf32>
    %cst = arith.constant dense<0.000000e+00> : vector<8x256xf32>
    %4 = tpu.matmul %0, %3, %cst {dimension_numbers = #tpu.dot_dimension_numbers<[1], [0], [0], [1], [0, 0, 1, 1], [], []>} : vector<8x3xf32>, vector<3x256xf32>, vector<8x256xf32> -> vector<8x256xf32>
    %5 = vector.broadcast %1 : vector<8x1xf32> to vector<8x256xf32>
    %6 = arith.addf %4, %5 : vector<8x256xf32>
    %cst_6 = arith.constant 0.000000e+00 : f32
    %7 = vector.broadcast %cst_6 : f32 to vector<8x256xf32>
    %8 = arith.maximumf %6, %7 : vector<8x256xf32>
    %c0_7 = arith.constant 0 : index
    %c0_8 = arith.constant 0 : index
    %c0_9 = arith.constant 0 : index
    %9 = vector.load %arg5[%c0_7, %c0_8, %c0_9] : memref<1x8x256xf32, #tpu.memory_space<vmem>>, vector<1x8x256xf32>
    %10 = vector.shape_cast %9 : vector<1x8x256xf32> to vector<8x256xf32>
    %11 = vector.shape_cast %8 : vector<8x256xf32> to vector<1x8x256xf32>
    tpu.vector_store %arg5[%c0_7, %c0_8, %c0_9], %11 {strides = array<i32>} : memref<1x8x256xf32, #tpu.memory_space<vmem>>, vector<1x8x256xf32>,
    return
  }
  func.func @transform_0(%arg0: i32, %arg1: i32) -> (i32, i32, i32) {
    %c0_i32 = arith.constant 0 : i32
    %c0_i32_0 = arith.constant 0 : i32
    return %arg0, %c0_i32, %arg1 : i32, i32, i32
  }
  func.func @transform_1(%arg0: i32, %arg1: i32) -> (i32, i32) {
    %c0_i32 = arith.constant 0 : i32
    %c0_i32_0 = arith.constant 0 : i32
    %c0_i32_1 = arith.constant 0 : i32
    return %c0_i32, %c0_i32_0 : i32, i32
  }
  func.func @transform_2(%arg0: i32, %arg1: i32) -> (i32, i32) {
    %c0_i32 = arith.constant 0 : i32
    %c0_i32_0 = arith.constant 0 : i32
    %c0_i32_1 = arith.constant 0 : i32
    return %c0_i32, %c0_i32_0 : i32, i32
  }
  func.func @transform_3(%arg0: i32, %arg1: i32) -> (i32, i32, i32) {
    %c0_i32 = arith.constant 0 : i32
    %c0_i32_0 = arith.constant 0 : i32
    return %arg0, %c0_i32, %arg1 : i32, i32, i32
  }
}

module attributes {stable_mosaic.version = 11 : i64} {
  func.func @kernel(%arg0: i32, %arg1: i32, %arg2: memref<1x8x256xf32, #tpu.memory_space<vmem>>, %arg3: memref<1x8x256xf32, #tpu.memory_space<vmem>>, %arg4: memref<16x8xf32, #tpu.memory_space<vmem>>, %arg5: memref<16x8xf32, #tpu.memory_space<vmem>>, %arg6: memref<16x1xf32, #tpu.memory_space<vmem>>, %arg7: memref<1x8x256xf32, #tpu.memory_space<vmem>>, %arg8: memref<1x8x256xf32, #tpu.memory_space<vmem>>) attributes {dimension_semantics = [#tpu.dimension_semantics<parallel>, #tpu.dimension_semantics<parallel>], iteration_bounds = array<i64: 2, 1>, scalar_prefetch = 0 : i64, scratch_operands = 0 : i64, tpu.core_type = #tpu.core_type<tc>, window_params = [{transform_indices = @transform_0, window_bounds = array<i64: 1, 8, 256>}, {transform_indices = @transform_1, window_bounds = array<i64: 1, 8, 256>}, {pipeline_mode = #tpu.pipeline_mode<synchronous>, transform_indices = @transform_2, window_bounds = array<i64: 16, 8>}, {pipeline_mode = #tpu.pipeline_mode<synchronous>, transform_indices = @transform_3, window_bounds = array<i64: 16, 8>}, {pipeline_mode = #tpu.pipeline_mode<synchronous>, transform_indices = @transform_4, window_bounds = array<i64: 16, 1>}, {transform_indices = @transform_5, window_bounds = array<i64: 1, 8, 256>}, {transform_indices = @transform_6, window_bounds = array<i64: 1, 8, 256>}]} {
    %c0 = arith.constant 0 : index
    %c0_0 = arith.constant 0 : index
    %0 = vector.load %arg4[%c0, %c0_0] : memref<16x8xf32, #tpu.memory_space<vmem>>, vector<16x8xf32>
    %c0_1 = arith.constant 0 : index
    %c0_2 = arith.constant 0 : index
    %1 = vector.load %arg5[%c0_1, %c0_2] : memref<16x8xf32, #tpu.memory_space<vmem>>, vector<16x8xf32>
    %c0_3 = arith.constant 0 : index
    %c0_4 = arith.constant 0 : index
    %2 = vector.load %arg6[%c0_3, %c0_4] : memref<16x1xf32, #tpu.memory_space<vmem>>, vector<16x1xf32>
    %c0_5 = arith.constant 0 : index
    %c0_6 = arith.constant 0 : index
    %c0_7 = arith.constant 0 : index
    %3 = vector.load %arg2[%c0_5, %c0_6, %c0_7] : memref<1x8x256xf32, #tpu.memory_space<vmem>>, vector<1x8x256xf32>
    %4 = vector.shape_cast %3 : vector<1x8x256xf32> to vector<8x256xf32>
    %cst = arith.constant dense<0.000000e+00> : vector<16x256xf32>
    %5 = tpu.matmul %0, %4, %cst {dimension_numbers = #tpu.dot_dimension_numbers<[1], [0], [0], [1], [0, 0, 1, 1], [], []>} : vector<16x8xf32>, vector<8x256xf32>, vector<16x256xf32> -> vector<16x256xf32>
    %c0_8 = arith.constant 0 : index
    %c0_9 = arith.constant 0 : index
    %c0_10 = arith.constant 0 : index
    %6 = vector.load %arg3[%c0_8, %c0_9, %c0_10] : memref<1x8x256xf32, #tpu.memory_space<vmem>>, vector<1x8x256xf32>
    %7 = vector.shape_cast %6 : vector<1x8x256xf32> to vector<8x256xf32>
    %cst_11 = arith.constant dense<0.000000e+00> : vector<16x256xf32>
    %8 = tpu.matmul %1, %7, %cst_11 {dimension_numbers = #tpu.dot_dimension_numbers<[1], [0], [0], [1], [0, 0, 1, 1], [], []>} : vector<16x8xf32>, vector<8x256xf32>, vector<16x256xf32> -> vector<16x256xf32>
    %9 = arith.addf %5, %8 : vector<16x256xf32>
    %10 = vector.broadcast %2 : vector<16x1xf32> to vector<16x256xf32>
    %11 = arith.addf %9, %10 : vector<16x256xf32>
    %cst_12 = arith.constant 0.000000e+00 : f32
    %12 = vector.broadcast %cst_12 : f32 to vector<16x256xf32>
    %13 = arith.maximumf %11, %12 : vector<16x256xf32>
    %14 = vector.extract_strided_slice %13 {offsets = [0, 0], sizes = [8, 256], strides = [1, 1]} : vector<16x256xf32> to vector<8x256xf32>
    %c0_13 = arith.constant 0 : index
    %c0_14 = arith.constant 0 : index
    %c0_15 = arith.constant 0 : index
    %15 = vector.load %arg7[%c0_13, %c0_14, %c0_15] : memref<1x8x256xf32, #tpu.memory_space<vmem>>, vector<1x8x256xf32>
    %16 = vector.shape_cast %15 : vector<1x8x256xf32> to vector<8x256xf32>
    %17 = vector.shape_cast %14 : vector<8x256xf32> to vector<1x8x256xf32>
    tpu.vector_store %arg7[%c0_13, %c0_14, %c0_15], %17 {strides = array<i32>} : memref<1x8x256xf32, #tpu.memory_space<vmem>>, vector<1x8x256xf32>,
    %18 = vector.extract_strided_slice %13 {offsets = [8, 0], sizes = [8, 256], strides = [1, 1]} : vector<16x256xf32> to vector<8x256xf32>
    %c0_16 = arith.constant 0 : index
    %c0_17 = arith.constant 0 : index
    %c0_18 = arith.constant 0 : index
    %19 = vector.load %arg8[%c0_16, %c0_17, %c0_18] : memref<1x8x256xf32, #tpu.memory_space<vmem>>, vector<1x8x256xf32>
    %20 = vector.shape_cast %19 : vector<1x8x256xf32> to vector<8x256xf32>
    %21 = vector.shape_cast %18 : vector<8x256xf32> to vector<1x8x256xf32>
    tpu.vector_store %arg8[%c0_16, %c0_17, %c0_18], %21 {strides = array<i32>} : memref<1x8x256xf32, #tpu.memory_space<vmem>>, vector<1x8x256xf32>,
    return
  }
  func.func @transform_0(%arg0: i32, %arg1: i32) -> (i32, i32, i32) {
    %c0_i32 = arith.constant 0 : i32
    %c0_i32_0 = arith.constant 0 : i32
    return %arg0, %c0_i32, %arg1 : i32, i32, i32
  }
  func.func @transform_1(%arg0: i32, %arg1: i32) -> (i32, i32, i32) {
    %c0_i32 = arith.constant 0 : i32
    %c0_i32_0 = arith.constant 0 : i32
    return %arg0, %c0_i32, %arg1 : i32, i32, i32
  }
  func.func @transform_2(%arg0: i32, %arg1: i32) -> (i32, i32) {
    %c0_i32 = arith.constant 0 : i32
    %c0_i32_0 = arith.constant 0 : i32
    %c0_i32_1 = arith.constant 0 : i32
    return %c0_i32, %c0_i32_0 : i32, i32
  }
  func.func @transform_3(%arg0: i32, %arg1: i32) -> (i32, i32) {
    %c0_i32 = arith.constant 0 : i32
    %c0_i32_0 = arith.constant 0 : i32
    %c0_i32_1 = arith.constant 0 : i32
    return %c0_i32, %c0_i32_0 : i32, i32
  }
  func.func @transform_4(%arg0: i32, %arg1: i32) -> (i32, i32) {
    %c0_i32 = arith.constant 0 : i32
    %c0_i32_0 = arith.constant 0 : i32
    %c0_i32_1 = arith.constant 0 : i32
    return %c0_i32, %c0_i32_0 : i32, i32
  }
  func.func @transform_5(%arg0: i32, %arg1: i32) -> (i32, i32, i32) {
    %c0_i32 = arith.constant 0 : i32
    %c0_i32_0 = arith.constant 0 : i32
    return %arg0, %c0_i32, %arg1 : i32, i32, i32
  }
  func.func @transform_6(%arg0: i32, %arg1: i32) -> (i32, i32, i32) {
    %c0_i32 = arith.constant 0 : i32
    %c0_i32_0 = arith.constant 0 : i32
    return %arg0, %c0_i32, %arg1 : i32, i32, i32
  }
}

module attributes {stable_mosaic.version = 11 : i64} {
  func.func @kernel(%arg0: i32, %arg1: i32, %arg2: memref<1x8x256xf32, #tpu.memory_space<vmem>>, %arg3: memref<1x8x256xf32, #tpu.memory_space<vmem>>, %arg4: memref<32x8xf32, #tpu.memory_space<vmem>>, %arg5: memref<32x1xf32, #tpu.memory_space<vmem>>, %arg6: memref<1x32x256xf32, #tpu.memory_space<vmem>>) attributes {dimension_semantics = [#tpu.dimension_semantics<parallel>, #tpu.dimension_semantics<parallel>], iteration_bounds = array<i64: 2, 1>, scalar_prefetch = 0 : i64, scratch_operands = 0 : i64, tpu.core_type = #tpu.core_type<tc>, window_params = [{transform_indices = @transform_0, window_bounds = array<i64: 1, 8, 256>}, {transform_indices = @transform_1, window_bounds = array<i64: 1, 8, 256>}, {pipeline_mode = #tpu.pipeline_mode<synchronous>, transform_indices = @transform_2, window_bounds = array<i64: 32, 8>}, {pipeline_mode = #tpu.pipeline_mode<synchronous>, transform_indices = @transform_3, window_bounds = array<i64: 32, 1>}, {transform_indices = @transform_4, window_bounds = array<i64: 1, 32, 256>}]} {
    %c0 = arith.constant 0 : index
    %c0_0 = arith.constant 0 : index
    %0 = vector.load %arg4[%c0, %c0_0] : memref<32x8xf32, #tpu.memory_space<vmem>>, vector<32x8xf32>
    %c0_1 = arith.constant 0 : index
    %c0_2 = arith.constant 0 : index
    %1 = vector.load %arg5[%c0_1, %c0_2] : memref<32x1xf32, #tpu.memory_space<vmem>>, vector<32x1xf32>
    %c0_3 = arith.constant 0 : index
    %c0_4 = arith.constant 0 : index
    %c0_5 = arith.constant 0 : index
    %2 = vector.load %arg2[%c0_3, %c0_4, %c0_5] : memref<1x8x256xf32, #tpu.memory_space<vmem>>, vector<1x8x256xf32>
    %3 = vector.shape_cast %2 : vector<1x8x256xf32> to vector<8x256xf32>
    %c0_6 = arith.constant 0 : index
    %c0_7 = arith.constant 0 : index
    %c0_8 = arith.constant 0 : index
    %4 = vector.load %arg3[%c0_6, %c0_7, %c0_8] : memref<1x8x256xf32, #tpu.memory_space<vmem>>, vector<1x8x256xf32>
    %5 = vector.shape_cast %4 : vector<1x8x256xf32> to vector<8x256xf32>
    %6 = arith.mulf %3, %3 : vector<8x256xf32>
    %7 = arith.mulf %5, %5 : vector<8x256xf32>
    %8 = arith.addf %6, %7 : vector<8x256xf32>
    %9 = math.sqrt %8 : vector<8x256xf32>
    %cst = arith.constant dense<0.000000e+00> : vector<32x256xf32>
    %10 = tpu.matmul %0, %9, %cst {dimension_numbers = #tpu.dot_dimension_numbers<[1], [0], [0], [1], [0, 0, 1, 1], [], []>} : vector<32x8xf32>, vector<8x256xf32>, vector<32x256xf32> -> vector<32x256xf32>
    %11 = vector.broadcast %1 : vector<32x1xf32> to vector<32x256xf32>
    %12 = arith.addf %10, %11 : vector<32x256xf32>
    %cst_9 = arith.constant 0.000000e+00 : f32
    %13 = vector.broadcast %cst_9 : f32 to vector<32x256xf32>
    %14 = arith.maximumf %12, %13 : vector<32x256xf32>
    %c0_10 = arith.constant 0 : index
    %c0_11 = arith.constant 0 : index
    %c0_12 = arith.constant 0 : index
    %15 = vector.load %arg6[%c0_10, %c0_11, %c0_12] : memref<1x32x256xf32, #tpu.memory_space<vmem>>, vector<1x32x256xf32>
    %16 = vector.shape_cast %15 : vector<1x32x256xf32> to vector<32x256xf32>
    %17 = vector.shape_cast %14 : vector<32x256xf32> to vector<1x32x256xf32>
    tpu.vector_store %arg6[%c0_10, %c0_11, %c0_12], %17 {strides = array<i32>} : memref<1x32x256xf32, #tpu.memory_space<vmem>>, vector<1x32x256xf32>,
    return
  }
  func.func @transform_0(%arg0: i32, %arg1: i32) -> (i32, i32, i32) {
    %c0_i32 = arith.constant 0 : i32
    %c0_i32_0 = arith.constant 0 : i32
    return %arg0, %c0_i32, %arg1 : i32, i32, i32
  }
  func.func @transform_1(%arg0: i32, %arg1: i32) -> (i32, i32, i32) {
    %c0_i32 = arith.constant 0 : i32
    %c0_i32_0 = arith.constant 0 : i32
    return %arg0, %c0_i32, %arg1 : i32, i32, i32
  }
  func.func @transform_2(%arg0: i32, %arg1: i32) -> (i32, i32) {
    %c0_i32 = arith.constant 0 : i32
    %c0_i32_0 = arith.constant 0 : i32
    %c0_i32_1 = arith.constant 0 : i32
    return %c0_i32, %c0_i32_0 : i32, i32
  }
  func.func @transform_3(%arg0: i32, %arg1: i32) -> (i32, i32) {
    %c0_i32 = arith.constant 0 : i32
    %c0_i32_0 = arith.constant 0 : i32
    %c0_i32_1 = arith.constant 0 : i32
    return %c0_i32, %c0_i32_0 : i32, i32
  }
  func.func @transform_4(%arg0: i32, %arg1: i32) -> (i32, i32, i32) {
    %c0_i32 = arith.constant 0 : i32
    %c0_i32_0 = arith.constant 0 : i32
    return %arg0, %c0_i32, %arg1 : i32, i32, i32
  }
}

</mosaic_0001>

<llo_original>
// kernel: fft_features_forward.3
$region0: #{fft_features_forward.3}
  #allocation0 [shape = 'u32[]', space=smem, size = 0x4, offset = 0x4, fixed_abs, tag = 'smem constant byte address 0x4 - core index']
  #allocation1 [shape = 'u32[72,128]{1,0:T(1,128)}', space=vmem, size = 0x9000, scoped, tag = 'internal scratch']
  %s0 = inlined_call_operand.vmem [shape: f32[2,3,256], index: 0, kind: input, shape index: {}]
  %s1 = inlined_call_operand.vmem [shape: f32[8,3], index: 1, kind: input, shape index: {}]
  %s2 = inlined_call_operand.vmem [shape: f32[8,1], index: 2, kind: input, shape index: {}]
  %s3 = inlined_call_operand.vmem [shape: f32[2,8,256], index: 3, kind: output, shape index: {}]
  %s4 = sld [smem:[#allocation0]]
  $region45: #{fft_features_forward.3} parent=0
    _
  %s6 = ssub.s32 1, %s4
  %s7 = scalar_select 0, %s6, %s4
  loop: start=0, step=1, limit=4
  $region2: #{fft_features_forward.3} parent=0 // loop_pre_header
    _
  $region3: #{fft_features_forward.3} parent=0 // loop_header
    %s9 = sphi 0, %s13
    %p10 = scmp.ge.s32.totalorder %s9, 4
    %s16 = sphi 0, %s28
    %s17 = sphi 0, %s24
    %s18 = sphi 0, %s16
    %s19 = sphi 0, %s17
    %s20 = sphi 0, %s18
    %s21 = sphi 0, %s19
    %s33 = sphi 0, %s35
    %s36 = sphi 0, %s33
    %s37 = sphi 0, %s36
    %s53 = sphi 0, %s37
    %s57 = sphi 0, %s57
    %s59 = sphi 0, %s57
    %s60 = sphi 0, %s59
    %s74 = sphi 0, %s60
    %s78 = sphi 0, %s78
    %s80 = sphi 0, %s78
    %s81 = sphi 0, %s80
    %s95 = sphi 0, %s81
    %s103 = sphi 0, %s105
    %s106 = sphi 0, %s103
    %s107 = sphi 0, %s106
    %s123 = sphi 0, %s107
  $region4: #{fft_features_forward.3} parent=0 // loop_header_branch
    %12 = sbr.rel (%p10) target = $region8
  $region5: #{fft_features_forward.3} parent=0 // loop_body
    %s14 = ssub.s32 %s9, 1
    %s15 = ssub.s32 %s9, 2
    %s22 = sadd.s32 1, %s17
    %p23 = scmp.ge.s32.totalorder %s22, 1
    %s24 = scalar_select %p23, 0, %s22
    %s25 = sadd.s32 1, %s16
    %s26 = scalar_select %p23, %s25, %s16
    %p27 = scmp.ge.s32.totalorder %s26, 2
    %s28 = scalar_select %p27, 0, %s26
    %s29 = ssub.s32 %s16, %s28
    %s30 = ssub.s32 %s17, %s24
    %s31 = sor.u32 %s29, %s30
    %p32 = scmp.eq.s32.totalorder %s31, 0
    %s34 = sadd.s32 %s33, 1
    %s35 = scalar_select %p32, %s33, %s34
    %p38 = pneg %p32
    %p39 = scmp.eq.s32.totalorder %s9, 1
    %p40 = por %p38, %p39
    %p41 = scmp.ne.s32.totalorder %s33, %s36
    %p42 = scmp.eq.s32.totalorder %s9, 0
    %p43 = por %p41, %p42
    %p44 = scmp.ne.s32.totalorder %s33, %s36
    %p45 = scmp.eq.s32.totalorder %s14, 1
    %p46 = por %p44, %p45
    %p47 = scmp.ne.s32.totalorder %s36, %s37
    %p48 = scmp.eq.s32.totalorder %s14, 0
    %p49 = por %p47, %p48
    %p50 = scmp.ne.s32.totalorder %s36, %s37
    %p51 = scmp.eq.s32.totalorder %s15, 1
    %p52 = por %p50, %p51
    %p54 = scmp.ne.s32.totalorder %s37, %s53
    %p55 = scmp.eq.s32.totalorder %s15, 0
    %p56 = por %p54, %p55
    %s58 = sadd.s32 %s57, 1
    %p61 = scmp.eq.s32.totalorder %s9, 1
    %p62 = scmp.ne.s32.totalorder %s57, %s59
    %p63 = scmp.eq.s32.totalorder %s9, 0
    %p64 = por %p62, %p63
    %p65 = scmp.ne.s32.totalorder %s57, %s59
    %p66 = scmp.eq.s32.totalorder %s14, 1
    %p67 = por %p65, %p66
    %p68 = scmp.ne.s32.totalorder %s59, %s60
    %p69 = scmp.eq.s32.totalorder %s14, 0
    %p70 = por %p68, %p69
    %p71 = scmp.ne.s32.totalorder %s59, %s60
    %p72 = scmp.eq.s32.totalorder %s15, 1
    %p73 = por %p71, %p72
    %p75 = scmp.ne.s32.totalorder %s60, %s74
    %p76 = scmp.eq.s32.totalorder %s15, 0
    %p77 = por %p75, %p76
    %s79 = sadd.s32 %s78, 1
    %p82 = scmp.eq.s32.totalorder %s9, 1
    %p83 = scmp.ne.s32.totalorder %s78, %s80
    %p84 = scmp.eq.s32.totalorder %s9, 0
    %p85 = por %p83, %p84
    %p86 = scmp.ne.s32.totalorder %s78, %s80
    %p87 = scmp.eq.s32.totalorder %s14, 1
    %p88 = por %p86, %p87
    %p89 = scmp.ne.s32.totalorder %s80, %s81
    %p90 = scmp.eq.s32.totalorder %s14, 0
    %p91 = por %p89, %p90
    %p92 = scmp.ne.s32.totalorder %s80, %s81
    %p93 = scmp.eq.s32.totalorder %s15, 1
    %p94 = por %p92, %p93
    %p96 = scmp.ne.s32.totalorder %s81, %s95
    %p97 = scmp.eq.s32.totalorder %s15, 0
    %p98 = por %p96, %p97
    %s99 = ssub.s32 %s16, %s28
    %s100 = ssub.s32 %s17, %s24
    %s101 = sor.u32 %s99, %s100
    %p102 = scmp.eq.s32.totalorder %s101, 0
    %s104 = sadd.s32 %s103, 1
    %s105 = scalar_select %p102, %s103, %s104
    %p108 = pneg %p102
    %p109 = scmp.eq.s32.totalorder %s9, 1
    %p110 = por %p108, %p109
    %p111 = scmp.ne.s32.totalorder %s103, %s106
    %p112 = scmp.eq.s32.totalorder %s9, 0
    %p113 = por %p111, %p112
    %p114 = scmp.ne.s32.totalorder %s103, %s106
    %p115 = scmp.eq.s32.totalorder %s14, 1
    %p116 = por %p114, %p115
    %p117 = scmp.ne.s32.totalorder %s106, %s107
    %p118 = scmp.eq.s32.totalorder %s14, 0
    %p119 = por %p117, %p118
    %p120 = scmp.ne.s32.totalorder %s106, %s107
    %p121 = scmp.eq.s32.totalorder %s15, 1
    %p122 = por %p120, %p121
    %p124 = scmp.ne.s32.totalorder %s107, %s123
    %p125 = scmp.eq.s32.totalorder %s15, 0
    %p126 = por %p124, %p125
    %p127 = scmp.le.s32.totalorder 1, %s9
    %p128 = scmp.lt.s32.totalorder %s9, 3
    %p129 = pnand %p127, %p128
    %p130 = pneg %p129
    // Predicated region
    $region9: #{fft_features_forward.3} parent=5 // pred_check
      _
    $region10: #{fft_features_forward.3} parent=5 // pred_check_branch
      %132 = sbr.rel (%p129) target = $region12
    $region11: #{fft_features_forward.3} parent=5 // pred_region
      %s133 = ssub.s32 %s9, 1
      // Predicated region
      $region13: #{fft_features_forward.3} parent=11 // pred_check
        %p134 = pneg %p70
      $region14: #{fft_features_forward.3} parent=11 // pred_check_branch
        %136 = sbr.rel (%p134) target = $region16
      $region15: #{fft_features_forward.3} parent=11 // pred_region
        _
      $region16: #{fft_features_forward.3} parent=11 // pred_fallthru
        _
      // Predicated region
      $region17: #{fft_features_forward.3} parent=11 // pred_check
        %p137 = pneg %p91
      $region18: #{fft_features_forward.3} parent=11 // pred_check_branch
        %139 = sbr.rel (%p137) target = $region20
      $region19: #{fft_features_forward.3} parent=11 // pred_region
        _
      $region20: #{fft_features_forward.3} parent=11 // pred_fallthru
        _
    $region12: #{fft_features_forward.3} parent=5 // pred_fallthru
      _
    %p140 = scmp.lt.s32.totalorder %s9, 2
    // Predicated region
    $region21: #{fft_features_forward.3} parent=5 // pred_check
      %p141 = pneg %p140
    $region22: #{fft_features_forward.3} parent=5 // pred_check_branch
      %143 = sbr.rel (%p141) target = $region24
    $region23: #{fft_features_forward.3} parent=5 // pred_region
      // Predicated region
      $region25: #{fft_features_forward.3} parent=23 // pred_check
        %p144 = pneg %p43
      $region26: #{fft_features_forward.3} parent=23 // pred_check_branch
        %146 = sbr.rel (%p144) target = $region28
      $region27: #{fft_features_forward.3} parent=23 // pred_region
        %s147 = smul.u32 2, %s17
        %p148 = scmp.lt.s32.totalorder %s16, 1
        %s149 = scalar_select %p148, %s16, 1
        %p150 = scmp.lt.s32.totalorder %s147, 1
        %s151 = scalar_select %p150, %s147, 1
        %s152 = smul.addr %s149, 2
        %s153 = sadd.s32 %s151, %s152
        %s154 = smul.addr %s153, 4
        %s155 = scalar_lea.vmem %s0, %s154
        %s156 = smul.u32 2, %s17
      $region28: #{fft_features_forward.3} parent=23 // pred_fallthru
        _
    $region24: #{fft_features_forward.3} parent=5 // pred_fallthru
      _
    %p157 = scmp.le.s32.totalorder 1, %s9
    %p158 = scmp.lt.s32.totalorder %s9, 3
    %p159 = pnand %p157, %p158
    %p160 = pneg %p159
    // Predicated region
    $region29: #{fft_features_forward.3} parent=5 // pred_check
      _
    $region30: #{fft_features_forward.3} parent=5 // pred_check_branch
      %162 = sbr.rel (%p159) target = $region32
    $region31: #{fft_features_forward.3} parent=5 // pred_region
      %s163 = ssub.s32 %s9, 1
      %s164 = smul.u32 2, %s19
      %p165 = scmp.lt.s32.totalorder %s18, 1
      %s166 = scalar_select %p165, %s18, 1
      %p167 = scmp.lt.s32.totalorder %s164, 1
      %s168 = scalar_select %p167, %s164, 1
      %s169 = smul.addr %s166, 2
      %s170 = sadd.s32 %s168, %s169
      %s171 = smul.addr %s170, 4
      %s172 = scalar_lea.vmem %s0, %s171
      %p173 = pneg %p49
      %p174 = pneg %p46
      %p175 = pneg %p70
      %p176 = pneg %p67
      %p177 = pneg %p91
      %p178 = pneg %p88
      %p179 = pneg %p119
      %p180 = pneg %p116
      %s181 = smul.u32 2, %s19
      %p182 = scmp.lt.s32.totalorder %s18, 1
      %s183 = scalar_select %p182, %s18, 1
      %p184 = scmp.lt.s32.totalorder %s181, 1
      %s185 = scalar_select %p184, %s181, 1
      %s186 = smul.addr %s183, 2
      %s187 = sadd.s32 %s185, %s186
      %s188 = smul.addr %s187, 8
      %s189 = scalar_lea.vmem %s3, %s188
      %s190 = smul.u32 2, %s19
      %p191 = scmp.lt.s32.totalorder %s18, 1
      %s192 = scalar_select %p191, %s18, 1
      %p193 = scmp.lt.s32.totalorder %s190, 1
      %s194 = scalar_select %p193, %s190, 1
      %s195 = smul.addr %s192, 2
      %s196 = sadd.s32 %s194, %s195
      %s197 = smul.addr %s196, 4
      %s198 = scalar_lea.vmem %s0, %s197
      %s199 = smul.u32 2, %s19
      %s200 = smul.u32 2, %s19
      %p201 = scmp.lt.s32.totalorder %s18, 1
      %s202 = scalar_select %p201, %s18, 1
      %p203 = scmp.lt.s32.totalorder %s200, 1
      %s204 = scalar_select %p203, %s200, 1
      %s205 = smul.addr %s202, 2
      %s206 = sadd.s32 %s204, %s205
      %s207 = smul.addr %s206, 8
      %s208 = scalar_lea.vmem %s3, %s207
      %s209 = smul.u32 2, %s19
      %v210 = vld [vmem:[%s1] sm:$0xff]
      %v211 = vld [vmem:[%s2] sm:$0xff]
      %v212 = vld [vmem:[%s198] sm:$0x77]
      %214 = vset.pattern.permute.xlu0 0
      %215 = vperm.xlu0 %214, %v211
      %v216 = vpop.permute.xlu0 %215
      %219 = vst [vmem:[#allocation1] ss:$2 sm:$0xff] %v212
      %v220 = vld.sshfl [vmem:[#allocation1] sm:$0xff pattern:$0x75316420]
      %v221 = vld.sshfl [vmem:[#allocation1 + $0x8] sm:$0xff pattern:$0x75316420]
      %vm222 = vcmask 23552
      %v224 = vsel %vm222, %v210, 0
      %vm226 = vcmask 1042432
      %v227 = vsel %vm226, %v220, 0
      %v229 = vsel %vm226, %v221, 0
      %231 = vmatpush.msra.mxu0 0.0
      %232 = vmatpush.msra.mxu0 0.0
      %233 = vmatpush.msra.mxu0 0.0
      %234 = vmatpush.msra.mxu0 0.0
      %235 = vmatpush.msra.mxu0 0.0
      %236 = vmatpush.msra.mxu0 0.0
      %237 = vmatpush.msra.mxu0 0.0
      %238 = vmatpush.msra.mxu0 0.0
      %239 = vmatpush.msra.mxu0 0.0
      %240 = vmatpush.msra.mxu0 0.0
      %241 = vmatpush.msra.mxu0 0.0
      %242 = vmatpush.msra.mxu0 0.0
      %243 = vmatpush.msra.mxu0 0.0
      %244 = vmatpush.msra.mxu0 0.0
      %245 = vmatpush.msra.mxu0 0.0
      %246 = vmatpush.msra.mxu0 %v227
      %247 = vmatmul.f32.gmra.mxu0 %v224
      %v248 = vpop.f32.mrf.mxu0
      %v249 = vadd.f32 %v216, %v248
      %250 = vdwg.mxu0
      %251 = vmatpush.msra.mxu0 0.0
      %252 = vmatpush.msra.mxu0 0.0
      %253 = vmatpush.msra.mxu0 0.0
      %254 = vmatpush.msra.mxu0 0.0
      %255 = vmatpush.msra.mxu0 0.0
      %256 = vmatpush.msra.mxu0 0.0
      %257 = vmatpush.msra.mxu0 0.0
      %258 = vmatpush.msra.mxu0 0.0
      %259 = vmatpush.msra.mxu0 0.0
      %260 = vmatpush.msra.mxu0 0.0
      %261 = vmatpush.msra.mxu0 0.0
      %262 = vmatpush.msra.mxu0 0.0
      %263 = vmatpush.msra.mxu0 0.0
      %264 = vmatpush.msra.mxu0 0.0
      %265 = vmatpush.msra.mxu0 0.0
      %266 = vmatpush.msra.mxu0 %v229
      %267 = vmatmul.f32.gmra.mxu0 %v224
      %v268 = vpop.f32.mrf.mxu0
      %v269 = vadd.f32 %v216, %v268
      %270 = vdwg.mxu0
      %v271 = vmax.f32 %v249, 0.0
      %v272 = vmax.f32 %v269, 0.0
      %273 = vst [vmem:[%s208] sm:$0xff] %v271
      %274 = vst [vmem:[%s208 + $0x8] sm:$0xff] %v272
      %s275 = smul.u32 2, %s19
      %p276 = scmp.lt.s32.totalorder %s18, 1
      %s277 = scalar_select %p276, %s18, 1
      %p278 = scmp.lt.s32.totalorder %s275, 1
      %s279 = scalar_select %p278, %s275, 1
      %s280 = smul.addr %s277, 2
      %s281 = sadd.s32 %s279, %s280
      %s282 = smul.addr %s281, 8
      %s283 = scalar_lea.vmem %s3, %s282
      // Predicated region
      $region33: #{fft_features_forward.3} parent=31 // pred_check
        %p284 = pneg %p116
      $region34: #{fft_features_forward.3} parent=31 // pred_check_branch
        %286 = sbr.rel (%p284) target = $region36
      $region35: #{fft_features_forward.3} parent=31 // pred_region
        %s287 = smul.u32 2, %s19
      $region36: #{fft_features_forward.3} parent=31 // pred_fallthru
        _
    $region32: #{fft_features_forward.3} parent=5 // pred_fallthru
      _
    %p288 = scmp.le.s32.totalorder 2, %s9
    // Predicated region
    $region37: #{fft_features_forward.3} parent=5 // pred_check
      %p289 = pneg %p288
    $region38: #{fft_features_forward.3} parent=5 // pred_check_branch
      %291 = sbr.rel (%p289) target = $region40
    $region39: #{fft_features_forward.3} parent=5 // pred_region
      %s292 = ssub.s32 %s9, 2
      // Predicated region
      $region41: #{fft_features_forward.3} parent=39 // pred_check
        %p293 = pneg %p122
      $region42: #{fft_features_forward.3} parent=39 // pred_check_branch
        %295 = sbr.rel (%p293) target = $region44
      $region43: #{fft_features_forward.3} parent=39 // pred_region
        %s296 = smul.u32 2, %s21
        %p297 = scmp.lt.s32.totalorder %s20, 1
        %s298 = scalar_select %p297, %s20, 1
        %p299 = scmp.lt.s32.totalorder %s296, 1
        %s300 = scalar_select %p299, %s296, 1
        %s301 = smul.addr %s298, 2
        %s302 = sadd.s32 %s300, %s301
        %s303 = smul.addr %s302, 8
        %s304 = scalar_lea.vmem %s3, %s303
      $region44: #{fft_features_forward.3} parent=39 // pred_fallthru
        _
    $region40: #{fft_features_forward.3} parent=5 // pred_fallthru
      _
  $region6: #{fft_features_forward.3} parent=0 // loop_footer
    %s13 = sadd.s32 1, %s9
  $region7: #{fft_features_forward.3} parent=0 // loop_footer_branch
    %8 = sbr.rel target = $region3
  $region8: #{fft_features_forward.3} parent=0 // loop_exit
    _

// kernel: fft_features_forward.4
$region0: #{fft_features_forward.4}
  #allocation0 [shape = 'u32[]', space=smem, size = 0x4, offset = 0x4, fixed_abs, tag = 'smem constant byte address 0x4 - core index']
  #allocation1 [shape = 'u32[72,128]{1,0:T(1,128)}', space=vmem, size = 0x9000, scoped, tag = 'internal scratch']
  %s0 = inlined_call_operand.vmem [shape: f32[2,8,256], index: 0, kind: input, shape index: {}]
  %s1 = inlined_call_operand.vmem [shape: f32[2,8,256], index: 1, kind: input, shape index: {}]
  %s2 = inlined_call_operand.vmem [shape: f32[16,8], index: 2, kind: input, shape index: {}]
  %s3 = inlined_call_operand.vmem [shape: f32[16,8], index: 3, kind: input, shape index: {}]
  %s4 = inlined_call_operand.vmem [shape: f32[16,1], index: 4, kind: input, shape index: {}]
  %s5 = inlined_call_operand.vmem [shape: f32[2,8,256], index: 5, kind: output, shape index: {0}]
  %s6 = inlined_call_operand.vmem [shape: f32[2,8,256], index: 6, kind: output, shape index: {1}]
  %7 = xla_tuple %s5, %s6
  %s8 = sld [smem:[#allocation0]]
  $region61: #{fft_features_forward.4} parent=0
    _
  %s10 = ssub.s32 1, %s8
  %s11 = scalar_select 0, %s10, %s8
  loop: start=0, step=1, limit=4
  $region2: #{fft_features_forward.4} parent=0 // loop_pre_header
    _
  $region3: #{fft_features_forward.4} parent=0 // loop_header
    %s13 = sphi 0, %s17
    %p14 = scmp.ge.s32.totalorder %s13, 4
    %s20 = sphi 0, %s32
    %s21 = sphi 0, %s28
    %s22 = sphi 0, %s20
    %s23 = sphi 0, %s21
    %s24 = sphi 0, %s22
    %s25 = sphi 0, %s23
    %s37 = sphi 0, %s39
    %s40 = sphi 0, %s37
    %s41 = sphi 0, %s40
    %s57 = sphi 0, %s41
    %s65 = sphi 0, %s67
    %s68 = sphi 0, %s65
    %s69 = sphi 0, %s68
    %s85 = sphi 0, %s69
    %s89 = sphi 0, %s89
    %s91 = sphi 0, %s89
    %s92 = sphi 0, %s91
    %s106 = sphi 0, %s92
    %s110 = sphi 0, %s110
    %s112 = sphi 0, %s110
    %s113 = sphi 0, %s112
    %s127 = sphi 0, %s113
    %s131 = sphi 0, %s131
    %s133 = sphi 0, %s131
    %s134 = sphi 0, %s133
    %s148 = sphi 0, %s134
    %s156 = sphi 0, %s158
    %s159 = sphi 0, %s156
    %s160 = sphi 0, %s159
    %s176 = sphi 0, %s160
    %s184 = sphi 0, %s186
    %s187 = sphi 0, %s184
    %s188 = sphi 0, %s187
    %s204 = sphi 0, %s188
  $region4: #{fft_features_forward.4} parent=0 // loop_header_branch
    %16 = sbr.rel (%p14) target = $region8
  $region5: #{fft_features_forward.4} parent=0 // loop_body
    %s18 = ssub.s32 %s13, 1
    %s19 = ssub.s32 %s13, 2
    %s26 = sadd.s32 1, %s21
    %p27 = scmp.ge.s32.totalorder %s26, 1
    %s28 = scalar_select %p27, 0, %s26
    %s29 = sadd.s32 1, %s20
    %s30 = scalar_select %p27, %s29, %s20
    %p31 = scmp.ge.s32.totalorder %s30, 2
    %s32 = scalar_select %p31, 0, %s30
    %s33 = ssub.s32 %s20, %s32
    %s34 = ssub.s32 %s21, %s28
    %s35 = sor.u32 %s33, %s34
    %p36 = scmp.eq.s32.totalorder %s35, 0
    %s38 = sadd.s32 %s37, 1
    %s39 = scalar_select %p36, %s37, %s38
    %p42 = pneg %p36
    %p43 = scmp.eq.s32.totalorder %s13, 1
    %p44 = por %p42, %p43
    %p45 = scmp.ne.s32.totalorder %s37, %s40
    %p46 = scmp.eq.s32.totalorder %s13, 0
    %p47 = por %p45, %p46
    %p48 = scmp.ne.s32.totalorder %s37, %s40
    %p49 = scmp.eq.s32.totalorder %s18, 1
    %p50 = por %p48, %p49
    %p51 = scmp.ne.s32.totalorder %s40, %s41
    %p52 = scmp.eq.s32.totalorder %s18, 0
    %p53 = por %p51, %p52
    %p54 = scmp.ne.s32.totalorder %s40, %s41
    %p55 = scmp.eq.s32.totalorder %s19, 1
    %p56 = por %p54, %p55
    %p58 = scmp.ne.s32.totalorder %s41, %s57
    %p59 = scmp.eq.s32.totalorder %s19, 0
    %p60 = por %p58, %p59
    %s61 = ssub.s32 %s20, %s32
    %s62 = ssub.s32 %s21, %s28
    %s63 = sor.u32 %s61, %s62
    %p64 = scmp.eq.s32.totalorder %s63, 0
    %s66 = sadd.s32 %s65, 1
    %s67 = scalar_select %p64, %s65, %s66
    %p70 = pneg %p64
    %p71 = scmp.eq.s32.totalorder %s13, 1
    %p72 = por %p70, %p71
    %p73 = scmp.ne.s32.totalorder %s65, %s68
    %p74 = scmp.eq.s32.totalorder %s13, 0
    %p75 = por %p73, %p74
    %p76 = scmp.ne.s32.totalorder %s65, %s68
    %p77 = scmp.eq.s32.totalorder %s18, 1
    %p78 = por %p76, %p77
    %p79 = scmp.ne.s32.totalorder %s68, %s69
    %p80 = scmp.eq.s32.totalorder %s18, 0
    %p81 = por %p79, %p80
    %p82 = scmp.ne.s32.totalorder %s68, %s69
    %p83 = scmp.eq.s32.totalorder %s19, 1
    %p84 = por %p82, %p83
    %p86 = scmp.ne.s32.totalorder %s69, %s85
    %p87 = scmp.eq.s32.totalorder %s19, 0
    %p88 = por %p86, %p87
    %s90 = sadd.s32 %s89, 1
    %p93 = scmp.eq.s32.totalorder %s13, 1
    %p94 = scmp.ne.s32.totalorder %s89, %s91
    %p95 = scmp.eq.s32.totalorder %s13, 0
    %p96 = por %p94, %p95
    %p97 = scmp.ne.s32.totalorder %s89, %s91
    %p98 = scmp.eq.s32.totalorder %s18, 1
    %p99 = por %p97, %p98
    %p100 = scmp.ne.s32.totalorder %s91, %s92
    %p101 = scmp.eq.s32.totalorder %s18, 0
    %p102 = por %p100, %p101
    %p103 = scmp.ne.s32.totalorder %s91, %s92
    %p104 = scmp.eq.s32.totalorder %s19, 1
    %p105 = por %p103, %p104
    %p107 = scmp.ne.s32.totalorder %s92, %s106
    %p108 = scmp.eq.s32.totalorder %s19, 0
    %p109 = por %p107, %p108
    %s111 = sadd.s32 %s110, 1
    %p114 = scmp.eq.s32.totalorder %s13, 1
    %p115 = scmp.ne.s32.totalorder %s110, %s112
    %p116 = scmp.eq.s32.totalorder %s13, 0
    %p117 = por %p115, %p116
    %p118 = scmp.ne.s32.totalorder %s110, %s112
    %p119 = scmp.eq.s32.totalorder %s18, 1
    %p120 = por %p118, %p119
    %p121 = scmp.ne.s32.totalorder %s112, %s113
    %p122 = scmp.eq.s32.totalorder %s18, 0
    %p123 = por %p121, %p122
    %p124 = scmp.ne.s32.totalorder %s112, %s113
    %p125 = scmp.eq.s32.totalorder %s19, 1
    %p126 = por %p124, %p125
    %p128 = scmp.ne.s32.totalorder %s113, %s127
    %p129 = scmp.eq.s32.totalorder %s19, 0
    %p130 = por %p128, %p129
    %s132 = sadd.s32 %s131, 1
    %p135 = scmp.eq.s32.totalorder %s13, 1
    %p136 = scmp.ne.s32.totalorder %s131, %s133
    %p137 = scmp.eq.s32.totalorder %s13, 0
    %p138 = por %p136, %p137
    %p139 = scmp.ne.s32.totalorder %s131, %s133
    %p140 = scmp.eq.s32.totalorder %s18, 1
    %p141 = por %p139, %p140
    %p142 = scmp.ne.s32.totalorder %s133, %s134
    %p143 = scmp.eq.s32.totalorder %s18, 0
    %p144 = por %p142, %p143
    %p145 = scmp.ne.s32.totalorder %s133, %s134
    %p146 = scmp.eq.s32.totalorder %s19, 1
    %p147 = por %p145, %p146
    %p149 = scmp.ne.s32.totalorder %s134, %s148
    %p150 = scmp.eq.s32.totalorder %s19, 0
    %p151 = por %p149, %p150
    %s152 = ssub.s32 %s20, %s32
    %s153 = ssub.s32 %s21, %s28
    %s154 = sor.u32 %s152, %s153
    %p155 = scmp.eq.s32.totalorder %s154, 0
    %s157 = sadd.s32 %s156, 1
    %s158 = scalar_select %p155, %s156, %s157
    %p161 = pneg %p155
    %p162 = scmp.eq.s32.totalorder %s13, 1
    %p163 = por %p161, %p162
    %p164 = scmp.ne.s32.totalorder %s156, %s159
    %p165 = scmp.eq.s32.totalorder %s13, 0
    %p166 = por %p164, %p165
    %p167 = scmp.ne.s32.totalorder %s156, %s159
    %p168 = scmp.eq.s32.totalorder %s18, 1
    %p169 = por %p167, %p168
    %p170 = scmp.ne.s32.totalorder %s159, %s160
    %p171 = scmp.eq.s32.totalorder %s18, 0
    %p172 = por %p170, %p171
    %p173 = scmp.ne.s32.totalorder %s159, %s160
    %p174 = scmp.eq.s32.totalorder %s19, 1
    %p175 = por %p173, %p174
    %p177 = scmp.ne.s32.totalorder %s160, %s176
    %p178 = scmp.eq.s32.totalorder %s19, 0
    %p179 = por %p177, %p178
    %s180 = ssub.s32 %s20, %s32
    %s181 = ssub.s32 %s21, %s28
    %s182 = sor.u32 %s180, %s181
    %p183 = scmp.eq.s32.totalorder %s182, 0
    %s185 = sadd.s32 %s184, 1
    %s186 = scalar_select %p183, %s184, %s185
    %p189 = pneg %p183
    %p190 = scmp.eq.s32.totalorder %s13, 1
    %p191 = por %p189, %p190
    %p192 = scmp.ne.s32.totalorder %s184, %s187
    %p193 = scmp.eq.s32.totalorder %s13, 0
    %p194 = por %p192, %p193
    %p195 = scmp.ne.s32.totalorder %s184, %s187
    %p196 = scmp.eq.s32.totalorder %s18, 1
    %p197 = por %p195, %p196
    %p198 = scmp.ne.s32.totalorder %s187, %s188
    %p199 = scmp.eq.s32.totalorder %s18, 0
    %p200 = por %p198, %p199
    %p201 = scmp.ne.s32.totalorder %s187, %s188
    %p202 = scmp.eq.s32.totalorder %s19, 1
    %p203 = por %p201, %p202
    %p205 = scmp.ne.s32.totalorder %s188, %s204
    %p206 = scmp.eq.s32.totalorder %s19, 0
    %p207 = por %p205, %p206
    %p208 = scmp.le.s32.totalorder 1, %s13
    %p209 = scmp.lt.s32.totalorder %s13, 3
    %p210 = pnand %p208, %p209
    %p211 = pneg %p210
    // Predicated region
    $region9: #{fft_features_forward.4} parent=5 // pred_check
      _
    $region10: #{fft_features_forward.4} parent=5 // pred_check_branch
      %213 = sbr.rel (%p210) target = $region12
    $region11: #{fft_features_forward.4} parent=5 // pred_region
      %s214 = ssub.s32 %s13, 1
      // Predicated region
      $region13: #{fft_features_forward.4} parent=11 // pred_check
        %p215 = pneg %p102
      $region14: #{fft_features_forward.4} parent=11 // pred_check_branch
        %217 = sbr.rel (%p215) target = $region16
      $region15: #{fft_features_forward.4} parent=11 // pred_region
        _
      $region16: #{fft_features_forward.4} parent=11 // pred_fallthru
        _
      // Predicated region
      $region17: #{fft_features_forward.4} parent=11 // pred_check
        %p218 = pneg %p123
      $region18: #{fft_features_forward.4} parent=11 // pred_check_branch
        %220 = sbr.rel (%p218) target = $region20
      $region19: #{fft_features_forward.4} parent=11 // pred_region
        _
      $region20: #{fft_features_forward.4} parent=11 // pred_fallthru
        _
      // Predicated region
      $region21: #{fft_features_forward.4} parent=11 // pred_check
        %p221 = pneg %p144
      $region22: #{fft_features_forward.4} parent=11 // pred_check_branch
        %223 = sbr.rel (%p221) target = $region24
      $region23: #{fft_features_forward.4} parent=11 // pred_region
        _
      $region24: #{fft_features_forward.4} parent=11 // pred_fallthru
        _
    $region12: #{fft_features_forward.4} parent=5 // pred_fallthru
      _
    %p224 = scmp.lt.s32.totalorder %s13, 2
    // Predicated region
    $region25: #{fft_features_forward.4} parent=5 // pred_check
      %p225 = pneg %p224
    $region26: #{fft_features_forward.4} parent=5 // pred_check_branch
      %227 = sbr.rel (%p225) target = $region28
    $region27: #{fft_features_forward.4} parent=5 // pred_region
      // Predicated region
      $region29: #{fft_features_forward.4} parent=27 // pred_check
        %p228 = pneg %p47
      $region30: #{fft_features_forward.4} parent=27 // pred_check_branch
        %230 = sbr.rel (%p228) target = $region32
      $region31: #{fft_features_forward.4} parent=27 // pred_region
        %s231 = smul.u32 2, %s21
        %p232 = scmp.lt.s32.totalorder %s20, 1
        %s233 = scalar_select %p232, %s20, 1
        %p234 = scmp.lt.s32.totalorder %s231, 1
        %s235 = scalar_select %p234, %s231, 1
        %s236 = smul.addr %s233, 2
        %s237 = sadd.s32 %s235, %s236
        %s238 = smul.addr %s237, 8
        %s239 = scalar_lea.vmem %s0, %s238
        %s240 = smul.u32 2, %s21
      $region32: #{fft_features_forward.4} parent=27 // pred_fallthru
        _
      // Predicated region
      $region33: #{fft_features_forward.4} parent=27 // pred_check
        %p241 = pneg %p75
      $region34: #{fft_features_forward.4} parent=27 // pred_check_branch
        %243 = sbr.rel (%p241) target = $region36
      $region35: #{fft_features_forward.4} parent=27 // pred_region
        %s244 = smul.u32 2, %s21
        %p245 = scmp.lt.s32.totalorder %s20, 1
        %s246 = scalar_select %p245, %s20, 1
        %p247 = scmp.lt.s32.totalorder %s244, 1
        %s248 = scalar_select %p247, %s244, 1
        %s249 = smul.addr %s246, 2
        %s250 = sadd.s32 %s248, %s249
        %s251 = smul.addr %s250, 8
        %s252 = scalar_lea.vmem %s1, %s251
        %s253 = smul.u32 2, %s21
      $region36: #{fft_features_forward.4} parent=27 // pred_fallthru
        _
    $region28: #{fft_features_forward.4} parent=5 // pred_fallthru
      _
    %p254 = scmp.le.s32.totalorder 1, %s13
    %p255 = scmp.lt.s32.totalorder %s13, 3
    %p256 = pnand %p254, %p255
    %p257 = pneg %p256
    // Predicated region
    $region37: #{fft_features_forward.4} parent=5 // pred_check
      _
    $region38: #{fft_features_forward.4} parent=5 // pred_check_branch
      %259 = sbr.rel (%p256) target = $region40
    $region39: #{fft_features_forward.4} parent=5 // pred_region
      %s260 = ssub.s32 %s13, 1
      %s261 = smul.u32 2, %s23
      %p262 = scmp.lt.s32.totalorder %s22, 1
      %s263 = scalar_select %p262, %s22, 1
      %p264 = scmp.lt.s32.totalorder %s261, 1
      %s265 = scalar_select %p264, %s261, 1
      %s266 = smul.addr %s263, 2
      %s267 = sadd.s32 %s265, %s266
      %s268 = smul.addr %s267, 8
      %s269 = scalar_lea.vmem %s0, %s268
      %p270 = pneg %p53
      %p271 = pneg %p50
      %s272 = smul.u32 2, %s23
      %p273 = scmp.lt.s32.totalorder %s22, 1
      %s274 = scalar_select %p273, %s22, 1
      %p275 = scmp.lt.s32.totalorder %s272, 1
      %s276 = scalar_select %p275, %s272, 1
      %s277 = smul.addr %s274, 2
      %s278 = sadd.s32 %s276, %s277
      %s279 = smul.addr %s278, 8
      %s280 = scalar_lea.vmem %s1, %s279
      %p281 = pneg %p81
      %p282 = pneg %p78
      %p283 = pneg %p102
      %p284 = pneg %p99
      %p285 = pneg %p123
      %p286 = pneg %p120
      %p287 = pneg %p144
      %p288 = pneg %p141
      %p289 = pneg %p172
      %p290 = pneg %p169
      %s291 = smul.u32 2, %s23
      %p292 = scmp.lt.s32.totalorder %s22, 1
      %s293 = scalar_select %p292, %s22, 1
      %p294 = scmp.lt.s32.totalorder %s291, 1
      %s295 = scalar_select %p294, %s291, 1
      %s296 = smul.addr %s293, 2
      %s297 = sadd.s32 %s295, %s296
      %s298 = smul.addr %s297, 8
      %s299 = scalar_lea.vmem %s5, %s298
      %p300 = pneg %p200
      %p301 = pneg %p197
      %s302 = smul.u32 2, %s23
      %p303 = scmp.lt.s32.totalorder %s22, 1
      %s304 = scalar_select %p303, %s22, 1
      %p305 = scmp.lt.s32.totalorder %s302, 1
      %s306 = scalar_select %p305, %s302, 1
      %s307 = smul.addr %s304, 2
      %s308 = sadd.s32 %s306, %s307
      %s309 = smul.addr %s308, 8
      %s310 = scalar_lea.vmem %s6, %s309
      %s311 = smul.u32 2, %s23
      %p312 = scmp.lt.s32.totalorder %s22, 1
      %s313 = scalar_select %p312, %s22, 1
      %p314 = scmp.lt.s32.totalorder %s311, 1
      %s315 = scalar_select %p314, %s311, 1
      %s316 = smul.addr %s313, 2
      %s317 = sadd.s32 %s315, %s316
      %s318 = smul.addr %s317, 8
      %s319 = scalar_lea.vmem %s0, %s318
      %s320 = smul.u32 2, %s23
      %s321 = smul.u32 2, %s23
      %p322 = scmp.lt.s32.totalorder %s22, 1
      %s323 = scalar_select %p322, %s22, 1
      %p324 = scmp.lt.s32.totalorder %s321, 1
      %s325 = scalar_select %p324, %s321, 1
      %s326 = smul.addr %s323, 2
      %s327 = sadd.s32 %s325, %s326
      %s328 = smul.addr %s327, 8
      %s329 = scalar_lea.vmem %s1, %s328
      %s330 = smul.u32 2, %s23
      %s331 = smul.u32 2, %s23
      %p332 = scmp.lt.s32.totalorder %s22, 1
      %s333 = scalar_select %p332, %s22, 1
      %p334 = scmp.lt.s32.totalorder %s331, 1
      %s335 = scalar_select %p334, %s331, 1
      %s336 = smul.addr %s333, 2
      %s337 = sadd.s32 %s335, %s336
      %s338 = smul.addr %s337, 8
      %s339 = scalar_lea.vmem %s5, %s338
      %s340 = smul.u32 2, %s23
      %s341 = smul.u32 2, %s23
      %p342 = scmp.lt.s32.totalorder %s22, 1
      %s343 = scalar_select %p342, %s22, 1
      %p344 = scmp.lt.s32.totalorder %s341, 1
      %s345 = scalar_select %p344, %s341, 1
      %s346 = smul.addr %s343, 2
      %s347 = sadd.s32 %s345, %s346
      %s348 = smul.addr %s347, 8
      %s349 = scalar_lea.vmem %s6, %s348
      %s350 = smul.u32 2, %s23
      %v351 = vld [vmem:[%s2] sm:$0xff]
      %v352 = vld [vmem:[%s2 + $0x8] sm:$0xff]
      %v353 = vld [vmem:[%s3] sm:$0xff]
      %v354 = vld [vmem:[%s3 + $0x8] sm:$0xff]
      %v355 = vld [vmem:[%s4] sm:$0xff]
      %v356 = vld [vmem:[%s4 + $0x8] sm:$0xff]
      %v357 = vld [vmem:[%s319] sm:$0xff]
      %v358 = vld [vmem:[%s319 + $0x8] sm:$0xff]
      %v359 = vld [vmem:[%s329] sm:$0xff]
      %v360 = vld [vmem:[%s329 + $0x8] sm:$0xff]
      %vm361 = vcmask 64512
      %v363 = vsel %vm361, %v353, 0
      %v366 = vsel %vm361, %v354, 0
      %368 = vmatpush.msra.mxu0 0.0
      %369 = vmatpush.msra.mxu0 0.0
      %370 = vmatpush.msra.mxu0 0.0
      %371 = vmatpush.msra.mxu0 0.0
      %372 = vmatpush.msra.mxu0 0.0
      %373 = vmatpush.msra.mxu0 0.0
      %374 = vmatpush.msra.mxu0 0.0
      %375 = vmatpush.msra.mxu0 0.0
      %376 = vmatpush.msra.mxu0 0.0
      %377 = vmatpush.msra.mxu0 0.0
      %378 = vmatpush.msra.mxu0 0.0
      %379 = vmatpush.msra.mxu0 0.0
      %380 = vmatpush.msra.mxu0 0.0
      %381 = vmatpush.msra.mxu0 0.0
      %382 = vmatpush.msra.mxu0 0.0
      %383 = vmatpush.msra.mxu0 %v359
      %384 = vmatmul.f32.gmra.mxu0 %v363
      %v385 = vpop.f32.mrf.mxu0
      %v386 = vadd.f32 0.0, %v385
      %387 = vmatmul.f32.gmra.mxu0 %v366
      %v388 = vpop.f32.mrf.mxu0
      %v389 = vadd.f32 0.0, %v388
      %390 = vdwg.mxu0
      %391 = vmatpush.msra.mxu0 0.0
      %392 = vmatpush.msra.mxu0 0.0
      %393 = vmatpush.msra.mxu0 0.0
      %394 = vmatpush.msra.mxu0 0.0
      %395 = vmatpush.msra.mxu0 0.0
      %396 = vmatpush.msra.mxu0 0.0
      %397 = vmatpush.msra.mxu0 0.0
      %398 = vmatpush.msra.mxu0 0.0
      %399 = vmatpush.msra.mxu0 0.0
      %400 = vmatpush.msra.mxu0 0.0
      %401 = vmatpush.msra.mxu0 0.0
      %402 = vmatpush.msra.mxu0 0.0
      %403 = vmatpush.msra.mxu0 0.0
      %404 = vmatpush.msra.mxu0 0.0
      %405 = vmatpush.msra.mxu0 0.0
      %406 = vmatpush.msra.mxu0 %v360
      %407 = vmatmul.f32.gmra.mxu0 %v363
      %v408 = vpop.f32.mrf.mxu0
      %v409 = vadd.f32 0.0, %v408
      %410 = vmatmul.f32.gmra.mxu0 %v366
      %v411 = vpop.f32.mrf.mxu0
      %v412 = vadd.f32 0.0, %v411
      %413 = vdwg.mxu0
      %v415 = vsel %vm361, %v351, 0
      %v418 = vsel %vm361, %v352, 0
      %420 = vmatpush.msra.mxu0 0.0
      %421 = vmatpush.msra.mxu0 0.0
      %422 = vmatpush.msra.mxu0 0.0
      %423 = vmatpush.msra.mxu0 0.0
      %424 = vmatpush.msra.mxu0 0.0
      %425 = vmatpush.msra.mxu0 0.0
      %426 = vmatpush.msra.mxu0 0.0
      %427 = vmatpush.msra.mxu0 0.0
      %428 = vmatpush.msra.mxu0 0.0
      %429 = vmatpush.msra.mxu0 0.0
      %430 = vmatpush.msra.mxu0 0.0
      %431 = vmatpush.msra.mxu0 0.0
      %432 = vmatpush.msra.mxu0 0.0
      %433 = vmatpush.msra.mxu0 0.0
      %434 = vmatpush.msra.mxu0 0.0
      %435 = vmatpush.msra.mxu0 %v357
      %436 = vmatmul.f32.gmra.mxu0 %v415
      %v437 = vpop.f32.mrf.mxu0
      %v438 = vadd.f32 %v386, %v437
      %439 = vmatmul.f32.gmra.mxu0 %v418
      %v440 = vpop.f32.mrf.mxu0
      %v441 = vadd.f32 %v389, %v440
      %442 = vdwg.mxu0
      %443 = vmatpush.msra.mxu0 0.0
      %444 = vmatpush.msra.mxu0 0.0
      %445 = vmatpush.msra.mxu0 0.0
      %446 = vmatpush.msra.mxu0 0.0
      %447 = vmatpush.msra.mxu0 0.0
      %448 = vmatpush.msra.mxu0 0.0
      %449 = vmatpush.msra.mxu0 0.0
      %450 = vmatpush.msra.mxu0 0.0
      %451 = vmatpush.msra.mxu0 0.0
      %452 = vmatpush.msra.mxu0 0.0
      %453 = vmatpush.msra.mxu0 0.0
      %454 = vmatpush.msra.mxu0 0.0
      %455 = vmatpush.msra.mxu0 0.0
      %456 = vmatpush.msra.mxu0 0.0
      %457 = vmatpush.msra.mxu0 0.0
      %458 = vmatpush.msra.mxu0 %v358
      %459 = vmatmul.f32.gmra.mxu0 %v415
      %v460 = vpop.f32.mrf.mxu0
      %v461 = vadd.f32 %v409, %v460
      %462 = vmatmul.f32.gmra.mxu0 %v418
      %v463 = vpop.f32.mrf.mxu0
      %v464 = vadd.f32 %v412, %v463
      %465 = vdwg.mxu0
      %467 = vset.pattern.permute.xlu0 0
      %468 = vperm.xlu0 %467, %v355
      %v469 = vpop.permute.xlu0 %468
      %472 = vset.pattern.permute.xlu0 0
      %473 = vperm.xlu0 %472, %v356
      %v474 = vpop.permute.xlu0 %473
      %v476 = vadd.f32 %v438, %v469
      %v477 = vadd.f32 %v461, %v469
      %v478 = vadd.f32 %v441, %v474
      %v479 = vadd.f32 %v464, %v474
      %v480 = vmax.f32 %v476, 0.0
      %v481 = vmax.f32 %v477, 0.0
      %v482 = vmax.f32 %v478, 0.0
      %v483 = vmax.f32 %v479, 0.0
      %484 = vst [vmem:[%s339] sm:$0xff] %v480
      %485 = vst [vmem:[%s339 + $0x8] sm:$0xff] %v481
      %486 = vst [vmem:[%s349] sm:$0xff] %v482
      %487 = vst [vmem:[%s349 + $0x8] sm:$0xff] %v483
      %s488 = smul.u32 2, %s23
      %p489 = scmp.lt.s32.totalorder %s22, 1
      %s490 = scalar_select %p489, %s22, 1
      %p491 = scmp.lt.s32.totalorder %s488, 1
      %s492 = scalar_select %p491, %s488, 1
      %s493 = smul.addr %s490, 2
      %s494 = sadd.s32 %s492, %s493
      %s495 = smul.addr %s494, 8
      %s496 = scalar_lea.vmem %s5, %s495
      %s497 = smul.u32 2, %s23
      %p498 = scmp.lt.s32.totalorder %s22, 1
      %s499 = scalar_select %p498, %s22, 1
      %p500 = scmp.lt.s32.totalorder %s497, 1
      %s501 = scalar_select %p500, %s497, 1
      %s502 = smul.addr %s499, 2
      %s503 = sadd.s32 %s501, %s502
      %s504 = smul.addr %s503, 8
      %s505 = scalar_lea.vmem %s6, %s504
      // Predicated region
      $region41: #{fft_features_forward.4} parent=39 // pred_check
        %p506 = pneg %p169
      $region42: #{fft_features_forward.4} parent=39 // pred_check_branch
        %508 = sbr.rel (%p506) target = $region44
      $region43: #{fft_features_forward.4} parent=39 // pred_region
        %s509 = smul.u32 2, %s23
      $region44: #{fft_features_forward.4} parent=39 // pred_fallthru
        _
      // Predicated region
      $region45: #{fft_features_forward.4} parent=39 // pred_check
        %p510 = pneg %p197
      $region46: #{fft_features_forward.4} parent=39 // pred_check_branch
        %512 = sbr.rel (%p510) target = $region48
      $region47: #{fft_features_forward.4} parent=39 // pred_region
        %s513 = smul.u32 2, %s23
      $region48: #{fft_features_forward.4} parent=39 // pred_fallthru
        _
    $region40: #{fft_features_forward.4} parent=5 // pred_fallthru
      _
    %p514 = scmp.le.s32.totalorder 2, %s13
    // Predicated region
    $region49: #{fft_features_forward.4} parent=5 // pred_check
      %p515 = pneg %p514
    $region50: #{fft_features_forward.4} parent=5 // pred_check_branch
      %517 = sbr.rel (%p515) target = $region52
    $region51: #{fft_features_forward.4} parent=5 // pred_region
      %s518 = ssub.s32 %s13, 2
      // Predicated region
      $region53: #{fft_features_forward.4} parent=51 // pred_check
        %p519 = pneg %p175
      $region54: #{fft_features_forward.4} parent=51 // pred_check_branch
        %521 = sbr.rel (%p519) target = $region56
      $region55: #{fft_features_forward.4} parent=51 // pred_region
        %s522 = smul.u32 2, %s25
        %p523 = scmp.lt.s32.totalorder %s24, 1
        %s524 = scalar_select %p523, %s24, 1
        %p525 = scmp.lt.s32.totalorder %s522, 1
        %s526 = scalar_select %p525, %s522, 1
        %s527 = smul.addr %s524, 2
        %s528 = sadd.s32 %s526, %s527
        %s529 = smul.addr %s528, 8
        %s530 = scalar_lea.vmem %s5, %s529
      $region56: #{fft_features_forward.4} parent=51 // pred_fallthru
        _
      // Predicated region
      $region57: #{fft_features_forward.4} parent=51 // pred_check
        %p531 = pneg %p203
      $region58: #{fft_features_forward.4} parent=51 // pred_check_branch
        %533 = sbr.rel (%p531) target = $region60
      $region59: #{fft_features_forward.4} parent=51 // pred_region
        %s534 = smul.u32 2, %s25
        %p535 = scmp.lt.s32.totalorder %s24, 1
        %s536 = scalar_select %p535, %s24, 1
        %p537 = scmp.lt.s32.totalorder %s534, 1
        %s538 = scalar_select %p537, %s534, 1
        %s539 = smul.addr %s536, 2
        %s540 = sadd.s32 %s538, %s539
        %s541 = smul.addr %s540, 8
        %s542 = scalar_lea.vmem %s6, %s541
      $region60: #{fft_features_forward.4} parent=51 // pred_fallthru
        _
    $region52: #{fft_features_forward.4} parent=5 // pred_fallthru
      _
  $region6: #{fft_features_forward.4} parent=0 // loop_footer
    %s17 = sadd.s32 1, %s13
  $region7: #{fft_features_forward.4} parent=0 // loop_footer_branch
    %12 = sbr.rel target = $region3
  $region8: #{fft_features_forward.4} parent=0 // loop_exit
    _

// kernel: fft_features_forward.5
$region0: #{fft_features_forward.5}
  #allocation0 [shape = 'u32[]', space=smem, size = 0x4, offset = 0x4, fixed_abs, tag = 'smem constant byte address 0x4 - core index']
  #allocation1 [shape = 'u32[72,128]{1,0:T(1,128)}', space=vmem, size = 0x9000, scoped, tag = 'internal scratch']
  %s0 = inlined_call_operand.vmem [shape: f32[2,8,256], index: 0, kind: input, shape index: {}]
  %s1 = inlined_call_operand.vmem [shape: f32[2,8,256], index: 1, kind: input, shape index: {}]
  %s2 = inlined_call_operand.vmem [shape: f32[32,8], index: 2, kind: input, shape index: {}]
  %s3 = inlined_call_operand.vmem [shape: f32[32,1], index: 3, kind: input, shape index: {}]
  %s4 = inlined_call_operand.vmem [shape: f32[2,32,256], index: 4, kind: output, shape index: {}]
  %s5 = sld [smem:[#allocation0]]
  $region49: #{fft_features_forward.5} parent=0
    _
  %s7 = ssub.s32 1, %s5
  %s8 = scalar_select 0, %s7, %s5
  loop: start=0, step=1, limit=4
  $region2: #{fft_features_forward.5} parent=0 // loop_pre_header
    _
  $region3: #{fft_features_forward.5} parent=0 // loop_header
    %s10 = sphi 0, %s14
    %p11 = scmp.ge.s32.totalorder %s10, 4
    %s17 = sphi 0, %s29
    %s18 = sphi 0, %s25
    %s19 = sphi 0, %s17
    %s20 = sphi 0, %s18
    %s21 = sphi 0, %s19
    %s22 = sphi 0, %s20
    %s34 = sphi 0, %s36
    %s37 = sphi 0, %s34
    %s38 = sphi 0, %s37
    %s54 = sphi 0, %s38
    %s62 = sphi 0, %s64
    %s65 = sphi 0, %s62
    %s66 = sphi 0, %s65
    %s82 = sphi 0, %s66
    %s86 = sphi 0, %s86
    %s88 = sphi 0, %s86
    %s89 = sphi 0, %s88
    %s103 = sphi 0, %s89
    %s107 = sphi 0, %s107
    %s109 = sphi 0, %s107
    %s110 = sphi 0, %s109
    %s124 = sphi 0, %s110
    %s132 = sphi 0, %s134
    %s135 = sphi 0, %s132
    %s136 = sphi 0, %s135
    %s152 = sphi 0, %s136
  $region4: #{fft_features_forward.5} parent=0 // loop_header_branch
    %13 = sbr.rel (%p11) target = $region8
  $region5: #{fft_features_forward.5} parent=0 // loop_body
    %s15 = ssub.s32 %s10, 1
    %s16 = ssub.s32 %s10, 2
    %s23 = sadd.s32 1, %s18
    %p24 = scmp.ge.s32.totalorder %s23, 1
    %s25 = scalar_select %p24, 0, %s23
    %s26 = sadd.s32 1, %s17
    %s27 = scalar_select %p24, %s26, %s17
    %p28 = scmp.ge.s32.totalorder %s27, 2
    %s29 = scalar_select %p28, 0, %s27
    %s30 = ssub.s32 %s17, %s29
    %s31 = ssub.s32 %s18, %s25
    %s32 = sor.u32 %s30, %s31
    %p33 = scmp.eq.s32.totalorder %s32, 0
    %s35 = sadd.s32 %s34, 1
    %s36 = scalar_select %p33, %s34, %s35
    %p39 = pneg %p33
    %p40 = scmp.eq.s32.totalorder %s10, 1
    %p41 = por %p39, %p40
    %p42 = scmp.ne.s32.totalorder %s34, %s37
    %p43 = scmp.eq.s32.totalorder %s10, 0
    %p44 = por %p42, %p43
    %p45 = scmp.ne.s32.totalorder %s34, %s37
    %p46 = scmp.eq.s32.totalorder %s15, 1
    %p47 = por %p45, %p46
    %p48 = scmp.ne.s32.totalorder %s37, %s38
    %p49 = scmp.eq.s32.totalorder %s15, 0
    %p50 = por %p48, %p49
    %p51 = scmp.ne.s32.totalorder %s37, %s38
    %p52 = scmp.eq.s32.totalorder %s16, 1
    %p53 = por %p51, %p52
    %p55 = scmp.ne.s32.totalorder %s38, %s54
    %p56 = scmp.eq.s32.totalorder %s16, 0
    %p57 = por %p55, %p56
    %s58 = ssub.s32 %s17, %s29
    %s59 = ssub.s32 %s18, %s25
    %s60 = sor.u32 %s58, %s59
    %p61 = scmp.eq.s32.totalorder %s60, 0
    %s63 = sadd.s32 %s62, 1
    %s64 = scalar_select %p61, %s62, %s63
    %p67 = pneg %p61
    %p68 = scmp.eq.s32.totalorder %s10, 1
    %p69 = por %p67, %p68
    %p70 = scmp.ne.s32.totalorder %s62, %s65
    %p71 = scmp.eq.s32.totalorder %s10, 0
    %p72 = por %p70, %p71
    %p73 = scmp.ne.s32.totalorder %s62, %s65
    %p74 = scmp.eq.s32.totalorder %s15, 1
    %p75 = por %p73, %p74
    %p76 = scmp.ne.s32.totalorder %s65, %s66
    %p77 = scmp.eq.s32.totalorder %s15, 0
    %p78 = por %p76, %p77
    %p79 = scmp.ne.s32.totalorder %s65, %s66
    %p80 = scmp.eq.s32.totalorder %s16, 1
    %p81 = por %p79, %p80
    %p83 = scmp.ne.s32.totalorder %s66, %s82
    %p84 = scmp.eq.s32.totalorder %s16, 0
    %p85 = por %p83, %p84
    %s87 = sadd.s32 %s86, 1
    %p90 = scmp.eq.s32.totalorder %s10, 1
    %p91 = scmp.ne.s32.totalorder %s86, %s88
    %p92 = scmp.eq.s32.totalorder %s10, 0
    %p93 = por %p91, %p92
    %p94 = scmp.ne.s32.totalorder %s86, %s88
    %p95 = scmp.eq.s32.totalorder %s15, 1
    %p96 = por %p94, %p95
    %p97 = scmp.ne.s32.totalorder %s88, %s89
    %p98 = scmp.eq.s32.totalorder %s15, 0
    %p99 = por %p97, %p98
    %p100 = scmp.ne.s32.totalorder %s88, %s89
    %p101 = scmp.eq.s32.totalorder %s16, 1
    %p102 = por %p100, %p101
    %p104 = scmp.ne.s32.totalorder %s89, %s103
    %p105 = scmp.eq.s32.totalorder %s16, 0
    %p106 = por %p104, %p105
    %s108 = sadd.s32 %s107, 1
    %p111 = scmp.eq.s32.totalorder %s10, 1
    %p112 = scmp.ne.s32.totalorder %s107, %s109
    %p113 = scmp.eq.s32.totalorder %s10, 0
    %p114 = por %p112, %p113
    %p115 = scmp.ne.s32.totalorder %s107, %s109
    %p116 = scmp.eq.s32.totalorder %s15, 1
    %p117 = por %p115, %p116
    %p118 = scmp.ne.s32.totalorder %s109, %s110
    %p119 = scmp.eq.s32.totalorder %s15, 0
    %p120 = por %p118, %p119
    %p121 = scmp.ne.s32.totalorder %s109, %s110
    %p122 = scmp.eq.s32.totalorder %s16, 1
    %p123 = por %p121, %p122
    %p125 = scmp.ne.s32.totalorder %s110, %s124
    %p126 = scmp.eq.s32.totalorder %s16, 0
    %p127 = por %p125, %p126
    %s128 = ssub.s32 %s17, %s29
    %s129 = ssub.s32 %s18, %s25
    %s130 = sor.u32 %s128, %s129
    %p131 = scmp.eq.s32.totalorder %s130, 0
    %s133 = sadd.s32 %s132, 1
    %s134 = scalar_select %p131, %s132, %s133
    %p137 = pneg %p131
    %p138 = scmp.eq.s32.totalorder %s10, 1
    %p139 = por %p137, %p138
    %p140 = scmp.ne.s32.totalorder %s132, %s135
    %p141 = scmp.eq.s32.totalorder %s10, 0
    %p142 = por %p140, %p141
    %p143 = scmp.ne.s32.totalorder %s132, %s135
    %p144 = scmp.eq.s32.totalorder %s15, 1
    %p145 = por %p143, %p144
    %p146 = scmp.ne.s32.totalorder %s135, %s136
    %p147 = scmp.eq.s32.totalorder %s15, 0
    %p148 = por %p146, %p147
    %p149 = scmp.ne.s32.totalorder %s135, %s136
    %p150 = scmp.eq.s32.totalorder %s16, 1
    %p151 = por %p149, %p150
    %p153 = scmp.ne.s32.totalorder %s136, %s152
    %p154 = scmp.eq.s32.totalorder %s16, 0
    %p155 = por %p153, %p154
    %p156 = scmp.le.s32.totalorder 1, %s10
    %p157 = scmp.lt.s32.totalorder %s10, 3
    %p158 = pnand %p156, %p157
    %p159 = pneg %p158
    // Predicated region
    $region9: #{fft_features_forward.5} parent=5 // pred_check
      _
    $region10: #{fft_features_forward.5} parent=5 // pred_check_branch
      %161 = sbr.rel (%p158) target = $region12
    $region11: #{fft_features_forward.5} parent=5 // pred_region
      %s162 = ssub.s32 %s10, 1
      // Predicated region
      $region13: #{fft_features_forward.5} parent=11 // pred_check
        %p163 = pneg %p99
      $region14: #{fft_features_forward.5} parent=11 // pred_check_branch
        %165 = sbr.rel (%p163) target = $region16
      $region15: #{fft_features_forward.5} parent=11 // pred_region
        _
      $region16: #{fft_features_forward.5} parent=11 // pred_fallthru
        _
      // Predicated region
      $region17: #{fft_features_forward.5} parent=11 // pred_check
        %p166 = pneg %p120
      $region18: #{fft_features_forward.5} parent=11 // pred_check_branch
        %168 = sbr.rel (%p166) target = $region20
      $region19: #{fft_features_forward.5} parent=11 // pred_region
        _
      $region20: #{fft_features_forward.5} parent=11 // pred_fallthru
        _
    $region12: #{fft_features_forward.5} parent=5 // pred_fallthru
      _
    %p169 = scmp.lt.s32.totalorder %s10, 2
    // Predicated region
    $region21: #{fft_features_forward.5} parent=5 // pred_check
      %p170 = pneg %p169
    $region22: #{fft_features_forward.5} parent=5 // pred_check_branch
      %172 = sbr.rel (%p170) target = $region24
    $region23: #{fft_features_forward.5} parent=5 // pred_region
      // Predicated region
      $region25: #{fft_features_forward.5} parent=23 // pred_check
        %p173 = pneg %p44
      $region26: #{fft_features_forward.5} parent=23 // pred_check_branch
        %175 = sbr.rel (%p173) target = $region28
      $region27: #{fft_features_forward.5} parent=23 // pred_region
        %s176 = smul.u32 2, %s18
        %p177 = scmp.lt.s32.totalorder %s17, 1
        %s178 = scalar_select %p177, %s17, 1
        %p179 = scmp.lt.s32.totalorder %s176, 1
        %s180 = scalar_select %p179, %s176, 1
        %s181 = smul.addr %s178, 2
        %s182 = sadd.s32 %s180, %s181
        %s183 = smul.addr %s182, 8
        %s184 = scalar_lea.vmem %s0, %s183
        %s185 = smul.u32 2, %s18
      $region28: #{fft_features_forward.5} parent=23 // pred_fallthru
        _
      // Predicated region
      $region29: #{fft_features_forward.5} parent=23 // pred_check
        %p186 = pneg %p72
      $region30: #{fft_features_forward.5} parent=23 // pred_check_branch
        %188 = sbr.rel (%p186) target = $region32
      $region31: #{fft_features_forward.5} parent=23 // pred_region
        %s189 = smul.u32 2, %s18
        %p190 = scmp.lt.s32.totalorder %s17, 1
        %s191 = scalar_select %p190, %s17, 1
        %p192 = scmp.lt.s32.totalorder %s189, 1
        %s193 = scalar_select %p192, %s189, 1
        %s194 = smul.addr %s191, 2
        %s195 = sadd.s32 %s193, %s194
        %s196 = smul.addr %s195, 8
        %s197 = scalar_lea.vmem %s1, %s196
        %s198 = smul.u32 2, %s18
      $region32: #{fft_features_forward.5} parent=23 // pred_fallthru
        _
    $region24: #{fft_features_forward.5} parent=5 // pred_fallthru
      _
    %p199 = scmp.le.s32.totalorder 1, %s10
    %p200 = scmp.lt.s32.totalorder %s10, 3
    %p201 = pnand %p199, %p200
    %p202 = pneg %p201
    // Predicated region
    $region33: #{fft_features_forward.5} parent=5 // pred_check
      _
    $region34: #{fft_features_forward.5} parent=5 // pred_check_branch
      %204 = sbr.rel (%p201) target = $region36
    $region35: #{fft_features_forward.5} parent=5 // pred_region
      %s205 = ssub.s32 %s10, 1
      %s206 = smul.u32 2, %s20
      %p207 = scmp.lt.s32.totalorder %s19, 1
      %s208 = scalar_select %p207, %s19, 1
      %p209 = scmp.lt.s32.totalorder %s206, 1
      %s210 = scalar_select %p209, %s206, 1
      %s211 = smul.addr %s208, 2
      %s212 = sadd.s32 %s210, %s211
      %s213 = smul.addr %s212, 8
      %s214 = scalar_lea.vmem %s0, %s213
      %p215 = pneg %p50
      %p216 = pneg %p47
      %s217 = smul.u32 2, %s20
      %p218 = scmp.lt.s32.totalorder %s19, 1
      %s219 = scalar_select %p218, %s19, 1
      %p220 = scmp.lt.s32.totalorder %s217, 1
      %s221 = scalar_select %p220, %s217, 1
      %s222 = smul.addr %s219, 2
      %s223 = sadd.s32 %s221, %s222
      %s224 = smul.addr %s223, 8
      %s225 = scalar_lea.vmem %s1, %s224
      %p226 = pneg %p78
      %p227 = pneg %p75
      %p228 = pneg %p99
      %p229 = pneg %p96
      %p230 = pneg %p120
      %p231 = pneg %p117
      %p232 = pneg %p148
      %p233 = pneg %p145
      %s234 = smul.u32 2, %s20
      %p235 = scmp.lt.s32.totalorder %s19, 1
      %s236 = scalar_select %p235, %s19, 1
      %p237 = scmp.lt.s32.totalorder %s234, 1
      %s238 = scalar_select %p237, %s234, 1
      %s239 = smul.addr %s236, 8
      %s240 = sadd.s32 %s238, %s239
      %s241 = smul.addr %s240, 8
      %s242 = scalar_lea.vmem %s4, %s241
      %s243 = smul.u32 2, %s20
      %p244 = scmp.lt.s32.totalorder %s19, 1
      %s245 = scalar_select %p244, %s19, 1
      %p246 = scmp.lt.s32.totalorder %s243, 1
      %s247 = scalar_select %p246, %s243, 1
      %s248 = smul.addr %s245, 2
      %s249 = sadd.s32 %s247, %s248
      %s250 = smul.addr %s249, 8
      %s251 = scalar_lea.vmem %s0, %s250
      %s252 = smul.u32 2, %s20
      %s253 = smul.u32 2, %s20
      %p254 = scmp.lt.s32.totalorder %s19, 1
      %s255 = scalar_select %p254, %s19, 1
      %p256 = scmp.lt.s32.totalorder %s253, 1
      %s257 = scalar_select %p256, %s253, 1
      %s258 = smul.addr %s255, 2
      %s259 = sadd.s32 %s257, %s258
      %s260 = smul.addr %s259, 8
      %s261 = scalar_lea.vmem %s1, %s260
      %s262 = smul.u32 2, %s20
      %s263 = smul.u32 2, %s20
      %p264 = scmp.lt.s32.totalorder %s19, 1
      %s265 = scalar_select %p264, %s19, 1
      %p266 = scmp.lt.s32.totalorder %s263, 1
      %s267 = scalar_select %p266, %s263, 1
      %s268 = smul.addr %s265, 8
      %s269 = sadd.s32 %s267, %s268
      %s270 = smul.addr %s269, 8
      %s271 = scalar_lea.vmem %s4, %s270
      %s272 = smul.u32 2, %s20
      %v273 = vld [vmem:[%s2] sm:$0xff]
      %v274 = vld [vmem:[%s2 + $0x8] sm:$0xff]
      %v275 = vld [vmem:[%s2 + $0x10] sm:$0xff]
      %v276 = vld [vmem:[%s2 + $0x18] sm:$0xff]
      %v277 = vld [vmem:[%s3] sm:$0xff]
      %v278 = vld [vmem:[%s3 + $0x8] sm:$0xff]
      %v279 = vld [vmem:[%s3 + $0x10] sm:$0xff]
      %v280 = vld [vmem:[%s3 + $0x18] sm:$0xff]
      %v281 = vld [vmem:[%s251] sm:$0xff]
      %v282 = vld [vmem:[%s251 + $0x8] sm:$0xff]
      %v283 = vld [vmem:[%s261] sm:$0xff]
      %v284 = vld [vmem:[%s261 + $0x8] sm:$0xff]
      %v285 = vmul.f32 %v281, %v281
      %v286 = vmul.f32 %v282, %v282
      %v287 = vmul.f32 %v283, %v283
      %v288 = vmul.f32 %v284, %v284
      %v289 = vadd.f32 %v285, %v287
      %v290 = vadd.f32 %v286, %v288
      %v291 = vrsqrt.pop %v289
      %v292 = vmul.f32 %v291, %v289
      %v293 = vmul.f32 %v292, %v291
      %v294 = vmul.f32 0.5, %v293
      %v295 = vsub.f32 1.5, %v294
      %v296 = vmul.f32 %v291, %v295
      %v297 = vmul.f32 %v289, %v296
      %vm298 = vcmp.eq.f32.partialorder %v289, inf
      %v299 = vsel %vm298, %v289, %v297
      %vm300 = vcmp.eq.f32.partialorder %v289, 0.0
      %v301 = vand.u32 %v289, 2147483648
      %v302 = vsel %vm300, %v301, %v299
      %v303 = vrsqrt.pop %v290
      %v304 = vmul.f32 %v303, %v290
      %v305 = vmul.f32 %v304, %v303
      %v306 = vmul.f32 0.5, %v305
      %v307 = vsub.f32 1.5, %v306
      %v308 = vmul.f32 %v303, %v307
      %v309 = vmul.f32 %v290, %v308
      %vm310 = vcmp.eq.f32.partialorder %v290, inf
      %v311 = vsel %vm310, %v290, %v309
      %vm312 = vcmp.eq.f32.partialorder %v290, 0.0
      %v313 = vand.u32 %v290, 2147483648
      %v314 = vsel %vm312, %v313, %v311
      %316 = vset.pattern.permute.xlu0 0
      %317 = vperm.xlu0 %316, %v277
      %v318 = vpop.permute.xlu0 %317
      %321 = vset.pattern.permute.xlu0 0
      %322 = vperm.xlu0 %321, %v278
      %v323 = vpop.permute.xlu0 %322
      %326 = vset.pattern.permute.xlu0 0
      %327 = vperm.xlu0 %326, %v279
      %v328 = vpop.permute.xlu0 %327
      %331 = vset.pattern.permute.xlu0 0
      %332 = vperm.xlu0 %331, %v280
      %v333 = vpop.permute.xlu0 %332
      %vm335 = vcmask 64512
      %v337 = vsel %vm335, %v273, 0
      %v340 = vsel %vm335, %v274, 0
      %v343 = vsel %vm335, %v275, 0
      %v346 = vsel %vm335, %v276, 0
      %348 = vmatpush.msra.mxu0 0.0
      %349 = vmatpush.msra.mxu0 0.0
      %350 = vmatpush.msra.mxu0 0.0
      %351 = vmatpush.msra.mxu0 0.0
      %352 = vmatpush.msra.mxu0 0.0
      %353 = vmatpush.msra.mxu0 0.0
      %354 = vmatpush.msra.mxu0 0.0
      %355 = vmatpush.msra.mxu0 0.0
      %356 = vmatpush.msra.mxu0 0.0
      %357 = vmatpush.msra.mxu0 0.0
      %358 = vmatpush.msra.mxu0 0.0
      %359 = vmatpush.msra.mxu0 0.0
      %360 = vmatpush.msra.mxu0 0.0
      %361 = vmatpush.msra.mxu0 0.0
      %362 = vmatpush.msra.mxu0 0.0
      %363 = vmatpush.msra.mxu0 %v302
      %364 = vmatmul.f32.gmra.mxu0 %v337
      %v365 = vpop.f32.mrf.mxu0
      %v366 = vadd.f32 %v318, %v365
      %367 = vmatmul.f32.gmra.mxu0 %v340
      %v368 = vpop.f32.mrf.mxu0
      %v369 = vadd.f32 %v323, %v368
      %370 = vmatmul.f32.gmra.mxu0 %v343
      %v371 = vpop.f32.mrf.mxu0
      %v372 = vadd.f32 %v328, %v371
      %373 = vmatmul.f32.gmra.mxu0 %v346
      %v374 = vpop.f32.mrf.mxu0
      %v375 = vadd.f32 %v333, %v374
      %376 = vdwg.mxu0
      %377 = vmatpush.msra.mxu0 0.0
      %378 = vmatpush.msra.mxu0 0.0
      %379 = vmatpush.msra.mxu0 0.0
      %380 = vmatpush.msra.mxu0 0.0
      %381 = vmatpush.msra.mxu0 0.0
      %382 = vmatpush.msra.mxu0 0.0
      %383 = vmatpush.msra.mxu0 0.0
      %384 = vmatpush.msra.mxu0 0.0
      %385 = vmatpush.msra.mxu0 0.0
      %386 = vmatpush.msra.mxu0 0.0
      %387 = vmatpush.msra.mxu0 0.0
      %388 = vmatpush.msra.mxu0 0.0
      %389 = vmatpush.msra.mxu0 0.0
      %390 = vmatpush.msra.mxu0 0.0
      %391 = vmatpush.msra.mxu0 0.0
      %392 = vmatpush.msra.mxu0 %v314
      %393 = vmatmul.f32.gmra.mxu0 %v337
      %v394 = vpop.f32.mrf.mxu0
      %v395 = vadd.f32 %v318, %v394
      %396 = vmatmul.f32.gmra.mxu0 %v340
      %v397 = vpop.f32.mrf.mxu0
      %v398 = vadd.f32 %v323, %v397
      %399 = vmatmul.f32.gmra.mxu0 %v343
      %v400 = vpop.f32.mrf.mxu0
      %v401 = vadd.f32 %v328, %v400
      %402 = vmatmul.f32.gmra.mxu0 %v346
      %v403 = vpop.f32.mrf.mxu0
      %v404 = vadd.f32 %v333, %v403
      %405 = vdwg.mxu0
      %v406 = vmax.f32 %v366, 0.0
      %v407 = vmax.f32 %v395, 0.0
      %v408 = vmax.f32 %v369, 0.0
      %v409 = vmax.f32 %v398, 0.0
      %v410 = vmax.f32 %v372, 0.0
      %v411 = vmax.f32 %v401, 0.0
      %v412 = vmax.f32 %v375, 0.0
      %v413 = vmax.f32 %v404, 0.0
      %414 = vst [vmem:[%s271] sm:$0xff] %v406
      %415 = vst [vmem:[%s271 + $0x8] sm:$0xff] %v407
      %416 = vst [vmem:[%s271 + $0x10] sm:$0xff] %v408
      %417 = vst [vmem:[%s271 + $0x18] sm:$0xff] %v409
      %418 = vst [vmem:[%s271 + $0x20] sm:$0xff] %v410
      %419 = vst [vmem:[%s271 + $0x28] sm:$0xff] %v411
      %420 = vst [vmem:[%s271 + $0x30] sm:$0xff] %v412
      %421 = vst [vmem:[%s271 + $0x38] sm:$0xff] %v413
      %s422 = smul.u32 2, %s20
      %p423 = scmp.lt.s32.totalorder %s19, 1
      %s424 = scalar_select %p423, %s19, 1
      %p425 = scmp.lt.s32.totalorder %s422, 1
      %s426 = scalar_select %p425, %s422, 1
      %s427 = smul.addr %s424, 8
      %s428 = sadd.s32 %s426, %s427
      %s429 = smul.addr %s428, 8
      %s430 = scalar_lea.vmem %s4, %s429
      // Predicated region
      $region37: #{fft_features_forward.5} parent=35 // pred_check
        %p431 = pneg %p145
      $region38: #{fft_features_forward.5} parent=35 // pred_check_branch
        %433 = sbr.rel (%p431) target = $region40
      $region39: #{fft_features_forward.5} parent=35 // pred_region
        %s434 = smul.u32 2, %s20
      $region40: #{fft_features_forward.5} parent=35 // pred_fallthru
        _
    $region36: #{fft_features_forward.5} parent=5 // pred_fallthru
      _
    %p435 = scmp.le.s32.totalorder 2, %s10
    // Predicated region
    $region41: #{fft_features_forward.5} parent=5 // pred_check
      %p436 = pneg %p435
    $region42: #{fft_features_forward.5} parent=5 // pred_check_branch
      %438 = sbr.rel (%p436) target = $region44
    $region43: #{fft_features_forward.5} parent=5 // pred_region
      %s439 = ssub.s32 %s10, 2
      // Predicated region
      $region45: #{fft_features_forward.5} parent=43 // pred_check
        %p440 = pneg %p151
      $region46: #{fft_features_forward.5} parent=43 // pred_check_branch
        %442 = sbr.rel (%p440) target = $region48
      $region47: #{fft_features_forward.5} parent=43 // pred_region
        %s443 = smul.u32 2, %s22
        %p444 = scmp.lt.s32.totalorder %s21, 1
        %s445 = scalar_select %p444, %s21, 1
        %p446 = scmp.lt.s32.totalorder %s443, 1
        %s447 = scalar_select %p446, %s443, 1
        %s448 = smul.addr %s445, 8
        %s449 = sadd.s32 %s447, %s448
        %s450 = smul.addr %s449, 8
        %s451 = scalar_lea.vmem %s4, %s450
      $region48: #{fft_features_forward.5} parent=43 // pred_fallthru
        _
    $region44: #{fft_features_forward.5} parent=5 // pred_fallthru
      _
  $region6: #{fft_features_forward.5} parent=0 // loop_footer
    %s14 = sadd.s32 1, %s10
  $region7: #{fft_features_forward.5} parent=0 // loop_footer_branch
    %9 = sbr.rel target = $region3
  $region8: #{fft_features_forward.5} parent=0 // loop_exit
    _

</llo_original>
